<compile_context>
chip_gen: v5e
topology: v5e:2x2
jax: 0.10.0
libtpu: 0.0.40
codegen_flags: <defaults>
</compile_context>

<pallas_src>
import numpy as np
import jax
import jax.numpy as jnp
from jax import lax
from jax.experimental import pallas as pl
from jax.experimental.pallas import tpu as pltpu

WIRES = 4
DEGREE = 5
DIM = 2 ** WIRES          # 16
OUT_LANES = 128


# --------------------------------------------------------------------------
# Parameter setup (mirrors QSVT.__init__), deterministic, host-side numpy.
# --------------------------------------------------------------------------
def make_qsvt_phis(degree=DEGREE):
    xs = np.linspace(-1.0, 1.0, 200)
    fx = sum(np.sin(k * np.pi * xs) for k in [1, 3, 5])
    poly = np.polyfit(xs, fx, deg=degree)
    poly = poly / (np.max(np.abs(np.polyval(poly, xs))) + 1e-06)
    odd_poly = [c if i % 2 == 1 else 0.0 for i, c in enumerate(poly[::-1])]
    return np.asarray(odd_poly, dtype=np.float32)  # increasing-degree coeffs


def make_signs():
    # signs[b, i] = PauliZ eigenvalue of basis state b on wire i (big-endian).
    b = np.arange(DIM)[:, None]
    i = np.arange(WIRES)[None, :]
    bits = (b >> (WIRES - 1 - i)) & 1
    return (1.0 - 2.0 * bits).astype(np.float32)  # (16, 4)


# --------------------------------------------------------------------------
# Pallas kernel: whole circuit built and evaluated in-kernel, one grid step
# per sample.
# --------------------------------------------------------------------------
def qsvt_kernel(prims_ref, phase_ref, out_ref):
    # prims_ref : SMEM (B, 16) f32 — per-sample [a0..a3 | b0..b3 | c0..c3 | s0..s3]
    #             a_i = x_i, b_i = sqrt(1-x_i^2), c_i = cos(x_i/2), s_i = sin(x_i/2)
    # phase_ref : VMEM (10, 16) f32 — rows 0..4 = Re(D_k), rows 5..9 = Im(D_k)
    #             with D_k = PCPhase diagonal exp(i*phi_k*pc_sign), k = 0..4
    # out_ref   : VMEM (1, 128) f32 — PauliZ expectations in lanes 0..3
    bidx = pl.program_id(0)
    f32 = jnp.float32
    prec = lax.Precision.HIGHEST

    a = [prims_ref[bidx, i] for i in range(WIRES)]
    bb = [prims_ref[bidx, WIRES + i] for i in range(WIRES)]
    c = [prims_ref[bidx, 2 * WIRES + i] for i in range(WIRES)]
    s = [prims_ref[bidx, 3 * WIRES + i] for i in range(WIRES)]

    # ---- UA: 16x16 real symmetric block encoding of diag(x), built on VPU ----
    # top-left 8x8 = [[diag(a), diag(b)], [diag(b), -diag(a)]], rest = identity.
    R = lax.broadcasted_iota(jnp.int32, (DIM, DIM), 0)
    C = lax.broadcasted_iota(jnp.int32, (DIM, DIM), 1)
    idx = R & 3

    def sel4(v):
        return jnp.where(idx == 0, v[0],
               jnp.where(idx == 1, v[1],
               jnp.where(idx == 2, v[2], v[3])))

    a_sel = sel4(a)
    b_sel = sel4(bb)
    ua = jnp.where((R < WIRES) & (C == R), a_sel, 0.0)
    ua = ua + jnp.where((R < WIRES) & (C == R + WIRES), b_sel, 0.0)
    ua = ua + jnp.where((R >= WIRES) & (R < 2 * WIRES) & (C == R - WIRES), b_sel, 0.0)
    ua = ua + jnp.where((R >= WIRES) & (R < 2 * WIRES) & (C == R), -a_sel, 0.0)
    ua = ua + ((R >= 2 * WIRES) & (C == R)).astype(f32)

    # ---- initial state: column 0 of (Pi_0 · RY-layer) as complex row (u, w) ----
    L = lax.broadcasted_iota(jnp.int32, (1, DIM), 1)
    ry = None
    for i in range(WIRES):
        bit = (L >> (WIRES - 1 - i)) & 1
        f = jnp.where(bit == 0, c[i], s[i])        # RY column-0 factor per wire
        ry = f if ry is None else ry * f           # (1, 16), real
    re0 = phase_ref[0:1, :]
    im0 = phase_ref[DEGREE:DEGREE + 1, :]
    u = ry * re0                                   # Re(state), (1, 16)
    w = ry * im0                                   # Im(state), (1, 16)

    # ---- chain: 5 applications of UA interleaved with PCPhase diagonals ------
    # UA is real symmetric (UA == UA^dagger), so row-vector right-multiplication
    # is exactly the circuit's left action; precision pinned to keep f32 MXU.
    for k in range(1, DEGREE):
        uu = jnp.dot(u, ua, precision=prec, preferred_element_type=f32)
        ww = jnp.dot(w, ua, precision=prec, preferred_element_type=f32)
        re_k = phase_ref[k:k + 1, :]
        im_k = phase_ref[DEGREE + k:DEGREE + k + 1, :]
        u = uu * re_k - ww * im_k
        w = uu * im_k + ww * re_k
    # Final UA.  The trailing diagonal gates (PCPhase(phi_5), RZ layer) have
    # unit-modulus diagonal entries so they cannot change |amplitude|^2 and are
    # dropped exactly.
    uu = jnp.dot(u, ua, precision=prec, preferred_element_type=f32)
    ww = jnp.dot(w, ua, precision=prec, preferred_element_type=f32)
    probs = uu * uu + ww * ww                      # (1, 16)

    # ---- PauliZ expectations: probs @ signs, signs built in-kernel (no DMA) ---
    RR = lax.broadcasted_iota(jnp.int32, (DIM, OUT_LANES), 0)
    LL = lax.broadcasted_iota(jnp.int32, (DIM, OUT_LANES), 1)
    sgn = jnp.zeros((DIM, OUT_LANES), f32)
    for i in range(WIRES):
        zi = 1.0 - 2.0 * ((RR >> (WIRES - 1 - i)) & 1).astype(f32)
        sgn = sgn + jnp.where(LL == i, zi, 0.0)
    out_ref[...] = jnp.dot(probs, sgn, precision=prec, preferred_element_type=f32)


def qsvt_pallas_call(prims, phase_tab):
    batch = prims.shape[0]
    return pl.pallas_call(
        qsvt_kernel,
        out_shape=jax.ShapeDtypeStruct((batch, 1, OUT_LANES), jnp.float32),
        grid=(batch,),
        in_specs=[
            pl.BlockSpec(memory_space=pltpu.MemorySpace.SMEM),   # (B,16) scalars
            pl.BlockSpec(memory_space=pltpu.MemorySpace.VMEM),   # (10,16) phase table
        ],
        out_specs=pl.BlockSpec((None, 1, OUT_LANES), lambda i: (i, 0, 0)),
        compiler_params=pltpu.CompilerParams(
            dimension_semantics=("parallel",)),    # shards batch across v7x cores
    )(prims, phase_tab)


# --------------------------------------------------------------------------
# Module wrapper (mirrors QSVT.forward; adds a batched entry point)
# --------------------------------------------------------------------------
class QSVTPallas:
    def __init__(self, wires=WIRES, degree=DEGREE):
        assert wires == WIRES and degree == DEGREE
        self.qsvt_phis = make_qsvt_phis(degree)  # (6,)
        self.theta = jax.random.normal(jax.random.PRNGKey(1), (wires,),
                                       dtype=jnp.float32)
        self.signs = make_signs()                # (16, 4), reference only

        # Static PCPhase diagonals D_k = exp(i * phi_k * pc_sign), k = 0..4.
        # TODO(synk): PennyLane's new qml.qsvt maps the polynomial to QSP angles
        # via poly_to_angles; here the normalized odd-poly coefficients are used
        # directly as PCPhase angles (old qml.qsvt convention), as before.
        ph = self.qsvt_phis.astype(np.float64)
        ph = ph / (np.max(np.abs(ph)) + 1e-06)
        pc_sign = np.where(np.arange(DIM) < WIRES, 1.0, -1.0)
        diags = np.exp(1j * np.outer(ph[:DEGREE], pc_sign))           # (5, 16)
        tab = np.concatenate([np.real(diags), np.imag(diags)], axis=0)  # (10, 16)
        self._phase_tab = jnp.asarray(tab, dtype=jnp.float32)

        self._fwd_batch = jax.jit(self._forward_batch)

    def _forward_batch(self, X):                 # X: (B, wires)
        X = X.astype(jnp.float32)
        a = X
        b = jnp.sqrt(jnp.clip(1.0 - X * X, 0.0, 1.0))
        c = jnp.cos(0.5 * X)
        s = jnp.sin(0.5 * X)
        prims = jnp.concatenate([a, b, c, s], axis=-1)   # (B, 16)
        out = qsvt_pallas_call(prims, self._phase_tab)   # (B, 1, 128)
        return out[:, 0, :WIRES]

    def forward_batch(self, X):
        return self._fwd_batch(X)

    def __call__(self, x):                       # per-sample, original semantics
        return self._fwd_batch(x[None])[0]


# --------------------------------------------------------------------------
# complex128 reference implementing the original (unfolded) 13-gate circuit
# --------------------------------------------------------------------------
def _ref_expvals(x_np, phis_np, theta_np, signs_np):
    ph = phis_np.astype(np.float64)
    ph = ph / (np.max(np.abs(ph)) + 1e-06)
    ry = np.array([[1.0]], dtype=np.complex128)
    for i in range(WIRES):
        c, s = np.cos(0.5 * x_np[i]), np.sin(0.5 * x_np[i])
        ry = np.kron(ry, np.array([[c, -s], [s, c]], dtype=np.complex128))
    a = x_np.astype(np.float64)
    b = np.sqrt(np.clip(1.0 - a * a, 0.0, 1.0))
    u8 = np.block([[np.diag(a), np.diag(b)], [np.diag(b), -np.diag(a)]])
    UA = np.eye(DIM, dtype=np.complex128)
    UA[: 2 * WIRES, : 2 * WIRES] = u8
    UAd = UA.conj().T
    pc_sign = np.where(np.arange(DIM) < WIRES, 1.0, -1.0)

    def pcphase(phi):
        return np.diag(np.exp(1j * pc_sign * phi))

    rz_d = np.ones(1, dtype=np.complex128)
    for i in range(WIRES):
        rz_d = np.kron(rz_d, np.array([np.exp(-0.5j * theta_np[i]),
                                       np.exp(0.5j * theta_np[i])]))
    gates = [ry, pcphase(ph[0])]
    for idx in range(1, len(ph)):
        gates.append(UA if (idx - 1) % 2 == 0 else UAd)
        gates.append(pcphase(ph[idx]))
    gates.append(np.diag(rz_d))

    st = np.zeros(DIM, dtype=np.complex128)
    st[0] = 1.0
    for g in gates:
        st = g @ st
    probs = np.abs(st) ** 2
    return (probs @ signs_np).astype(np.float32)


if __name__ == "__main__":
    key = jax.random.PRNGKey(0)
    k1, k2 = jax.random.split(key)

    model = QSVTPallas(wires=WIRES, degree=DEGREE)

    # ---- single-sample forward (original module semantics) -----------------
    x = jax.random.uniform(k1, (WIRES,), minval=-0.9, maxval=0.9,
                           dtype=jnp.float32)
    out = jax.block_until_ready(model(x))
    assert out.shape == (WIRES,)
    ref = _ref_expvals(np.asarray(x, dtype=np.float64),
                       model.qsvt_phis,
                       np.asarray(model.theta, dtype=np.float64),
                       model.signs.astype(np.float64))
    np.testing.assert_allclose(np.asarray(out), ref, atol=1e-4, rtol=1e-4)

    # ---- batched forward: B samples, one pallas_call, parallel batch axis ---
    B = 8
    xb = jax.random.uniform(k2, (B, WIRES), minval=-0.9, maxval=0.9,
                            dtype=jnp.float32)
    outb = jax.block_until_ready(model.forward_batch(xb))
    assert outb.shape == (B, WIRES)
    for i in range(B):
        refi = _ref_expvals(np.asarray(xb[i], dtype=np.float64),
                            model.qsvt_phis,
                            np.asarray(model.theta, dtype=np.float64),
                            model.signs.astype(np.float64))
        np.testing.assert_allclose(np.asarray(outb[i]), refi,
                                   atol=1e-4, rtol=1e-4)

    print("KERNEL_OK")
</pallas_src>

<mosaic_0001>
module attributes {stable_mosaic.version = 11 : i64} {
  func.func @qsvt_kernel(%arg0: i32, %arg1: memref<1x16xf32, #tpu.memory_space<smem>>, %arg2: memref<10x16xf32, #tpu.memory_space<vmem>>, %arg3: memref<1x1x128xf32, #tpu.memory_space<vmem>>) attributes {dimension_semantics = [#tpu.dimension_semantics<parallel>], iteration_bounds = array<i64: 1>, scalar_prefetch = 0 : i64, scratch_operands = 0 : i64, tpu.core_type = #tpu.core_type<tc>, window_params = [{transform_indices = @transform_0, window_bounds = array<i64: 1, 16>}, {pipeline_mode = #tpu.pipeline_mode<synchronous>, transform_indices = @transform_1, window_bounds = array<i64: 10, 16>}, {transform_indices = @transform_2, window_bounds = array<i64: 1, 1, 128>}]} {
    %0 = arith.index_cast %arg0 : i32 to index
    %c0 = arith.constant 0 : index
    %1 = memref.load %arg1[%0, %c0] : memref<1x16xf32, #tpu.memory_space<smem>>
    %2 = arith.index_cast %arg0 : i32 to index
    %c1 = arith.constant 1 : index
    %3 = memref.load %arg1[%2, %c1] : memref<1x16xf32, #tpu.memory_space<smem>>
    %4 = arith.index_cast %arg0 : i32 to index
    %c2 = arith.constant 2 : index
    %5 = memref.load %arg1[%4, %c2] : memref<1x16xf32, #tpu.memory_space<smem>>
    %6 = arith.index_cast %arg0 : i32 to index
    %c3 = arith.constant 3 : index
    %7 = memref.load %arg1[%6, %c3] : memref<1x16xf32, #tpu.memory_space<smem>>
    %8 = arith.index_cast %arg0 : i32 to index
    %c4 = arith.constant 4 : index
    %9 = memref.load %arg1[%8, %c4] : memref<1x16xf32, #tpu.memory_space<smem>>
    %10 = arith.index_cast %arg0 : i32 to index
    %c5 = arith.constant 5 : index
    %11 = memref.load %arg1[%10, %c5] : memref<1x16xf32, #tpu.memory_space<smem>>
    %12 = arith.index_cast %arg0 : i32 to index
    %c6 = arith.constant 6 : index
    %13 = memref.load %arg1[%12, %c6] : memref<1x16xf32, #tpu.memory_space<smem>>
    %14 = arith.index_cast %arg0 : i32 to index
    %c7 = arith.constant 7 : index
    %15 = memref.load %arg1[%14, %c7] : memref<1x16xf32, #tpu.memory_space<smem>>
    %16 = arith.index_cast %arg0 : i32 to index
    %c8 = arith.constant 8 : index
    %17 = memref.load %arg1[%16, %c8] : memref<1x16xf32, #tpu.memory_space<smem>>
    %18 = arith.index_cast %arg0 : i32 to index
    %c9 = arith.constant 9 : index
    %19 = memref.load %arg1[%18, %c9] : memref<1x16xf32, #tpu.memory_space<smem>>
    %20 = arith.index_cast %arg0 : i32 to index
    %c10 = arith.constant 10 : index
    %21 = memref.load %arg1[%20, %c10] : memref<1x16xf32, #tpu.memory_space<smem>>
    %22 = arith.index_cast %arg0 : i32 to index
    %c11 = arith.constant 11 : index
    %23 = memref.load %arg1[%22, %c11] : memref<1x16xf32, #tpu.memory_space<smem>>
    %24 = arith.index_cast %arg0 : i32 to index
    %c12 = arith.constant 12 : index
    %25 = memref.load %arg1[%24, %c12] : memref<1x16xf32, #tpu.memory_space<smem>>
    %26 = arith.index_cast %arg0 : i32 to index
    %c13 = arith.constant 13 : index
    %27 = memref.load %arg1[%26, %c13] : memref<1x16xf32, #tpu.memory_space<smem>>
    %28 = arith.index_cast %arg0 : i32 to index
    %c14 = arith.constant 14 : index
    %29 = memref.load %arg1[%28, %c14] : memref<1x16xf32, #tpu.memory_space<smem>>
    %30 = arith.index_cast %arg0 : i32 to index
    %c15 = arith.constant 15 : index
    %31 = memref.load %arg1[%30, %c15] : memref<1x16xf32, #tpu.memory_space<smem>>
    %32 = tpu.iota {dimensions = array<i32: 0>} : vector<16x16xi32>
    %33 = tpu.iota {dimensions = array<i32: 1>} : vector<16x16xi32>
    %c3_i32 = arith.constant 3 : i32
    %34 = vector.broadcast %c3_i32 : i32 to vector<16x16xi32>
    %35 = arith.andi %32, %34 : vector<16x16xi32>
    %c0_i32 = arith.constant 0 : i32
    %36 = vector.broadcast %c0_i32 : i32 to vector<16x16xi32>
    %37 = arith.cmpi eq, %35, %36 : vector<16x16xi32>
    %c1_i32 = arith.constant 1 : i32
    %38 = vector.broadcast %c1_i32 : i32 to vector<16x16xi32>
    %39 = arith.cmpi eq, %35, %38 : vector<16x16xi32>
    %c2_i32 = arith.constant 2 : i32
    %40 = vector.broadcast %c2_i32 : i32 to vector<16x16xi32>
    %41 = arith.cmpi eq, %35, %40 : vector<16x16xi32>
    %42 = vector.broadcast %5 : f32 to vector<16x16xf32>
    %43 = vector.broadcast %7 : f32 to vector<16x16xf32>
    %44 = arith.select %41, %42, %43 : vector<16x16xi1>, vector<16x16xf32>
    %45 = vector.broadcast %3 : f32 to vector<16x16xf32>
    %46 = arith.select %39, %45, %44 : vector<16x16xi1>, vector<16x16xf32>
    %47 = vector.broadcast %1 : f32 to vector<16x16xf32>
    %48 = arith.select %37, %47, %46 : vector<16x16xi1>, vector<16x16xf32>
    %c0_i32_0 = arith.constant 0 : i32
    %49 = vector.broadcast %c0_i32_0 : i32 to vector<16x16xi32>
    %50 = arith.cmpi eq, %35, %49 : vector<16x16xi32>
    %c1_i32_1 = arith.constant 1 : i32
    %51 = vector.broadcast %c1_i32_1 : i32 to vector<16x16xi32>
    %52 = arith.cmpi eq, %35, %51 : vector<16x16xi32>
    %c2_i32_2 = arith.constant 2 : i32
    %53 = vector.broadcast %c2_i32_2 : i32 to vector<16x16xi32>
    %54 = arith.cmpi eq, %35, %53 : vector<16x16xi32>
    %55 = vector.broadcast %13 : f32 to vector<16x16xf32>
    %56 = vector.broadcast %15 : f32 to vector<16x16xf32>
    %57 = arith.select %54, %55, %56 : vector<16x16xi1>, vector<16x16xf32>
    %58 = vector.broadcast %11 : f32 to vector<16x16xf32>
    %59 = arith.select %52, %58, %57 : vector<16x16xi1>, vector<16x16xf32>
    %60 = vector.broadcast %9 : f32 to vector<16x16xf32>
    %61 = arith.select %50, %60, %59 : vector<16x16xi1>, vector<16x16xf32>
    %c4_i32 = arith.constant 4 : i32
    %62 = vector.broadcast %c4_i32 : i32 to vector<16x16xi32>
    %63 = arith.cmpi slt, %32, %62 : vector<16x16xi32>
    %64 = arith.cmpi eq, %33, %32 : vector<16x16xi32>
    %65 = arith.andi %63, %64 : vector<16x16xi1>
    %cst = arith.constant 0.000000e+00 : f32
    %66 = vector.broadcast %cst : f32 to vector<16x16xf32>
    %67 = arith.select %65, %48, %66 : vector<16x16xi1>, vector<16x16xf32>
    %c4_i32_3 = arith.constant 4 : i32
    %68 = vector.broadcast %c4_i32_3 : i32 to vector<16x16xi32>
    %69 = arith.cmpi slt, %32, %68 : vector<16x16xi32>
    %c4_i32_4 = arith.constant 4 : i32
    %70 = vector.broadcast %c4_i32_4 : i32 to vector<16x16xi32>
    %71 = arith.addi %32, %70 : vector<16x16xi32>
    %72 = arith.cmpi eq, %33, %71 : vector<16x16xi32>
    %73 = arith.andi %69, %72 : vector<16x16xi1>
    %cst_5 = arith.constant 0.000000e+00 : f32
    %74 = vector.broadcast %cst_5 : f32 to vector<16x16xf32>
    %75 = arith.select %73, %61, %74 : vector<16x16xi1>, vector<16x16xf32>
    %76 = arith.addf %67, %75 : vector<16x16xf32>
    %c4_i32_6 = arith.constant 4 : i32
    %77 = vector.broadcast %c4_i32_6 : i32 to vector<16x16xi32>
    %78 = arith.cmpi sge, %32, %77 : vector<16x16xi32>
    %c8_i32 = arith.constant 8 : i32
    %79 = vector.broadcast %c8_i32 : i32 to vector<16x16xi32>
    %80 = arith.cmpi slt, %32, %79 : vector<16x16xi32>
    %81 = arith.andi %78, %80 : vector<16x16xi1>
    %c4_i32_7 = arith.constant 4 : i32
    %82 = vector.broadcast %c4_i32_7 : i32 to vector<16x16xi32>
    %83 = arith.subi %32, %82 : vector<16x16xi32>
    %84 = arith.cmpi eq, %33, %83 : vector<16x16xi32>
    %85 = arith.andi %81, %84 : vector<16x16xi1>
    %cst_8 = arith.constant 0.000000e+00 : f32
    %86 = vector.broadcast %cst_8 : f32 to vector<16x16xf32>
    %87 = arith.select %85, %61, %86 : vector<16x16xi1>, vector<16x16xf32>
    %88 = arith.addf %76, %87 : vector<16x16xf32>
    %c4_i32_9 = arith.constant 4 : i32
    %89 = vector.broadcast %c4_i32_9 : i32 to vector<16x16xi32>
    %90 = arith.cmpi sge, %32, %89 : vector<16x16xi32>
    %c8_i32_10 = arith.constant 8 : i32
    %91 = vector.broadcast %c8_i32_10 : i32 to vector<16x16xi32>
    %92 = arith.cmpi slt, %32, %91 : vector<16x16xi32>
    %93 = arith.andi %90, %92 : vector<16x16xi1>
    %94 = arith.cmpi eq, %33, %32 : vector<16x16xi32>
    %95 = arith.andi %93, %94 : vector<16x16xi1>
    %cst_11 = arith.constant 0.000000e+00 : f32
    %96 = vector.broadcast %cst_11 : f32 to vector<16x16xf32>
    %97 = arith.subf %96, %48 : vector<16x16xf32>
    %cst_12 = arith.constant 0.000000e+00 : f32
    %98 = vector.broadcast %cst_12 : f32 to vector<16x16xf32>
    %99 = arith.select %95, %97, %98 : vector<16x16xi1>, vector<16x16xf32>
    %100 = arith.addf %88, %99 : vector<16x16xf32>
    %c8_i32_13 = arith.constant 8 : i32
    %101 = vector.broadcast %c8_i32_13 : i32 to vector<16x16xi32>
    %102 = arith.cmpi sge, %32, %101 : vector<16x16xi32>
    %103 = arith.cmpi eq, %33, %32 : vector<16x16xi32>
    %104 = arith.andi %102, %103 : vector<16x16xi1>
    %105 = arith.extui %104 : vector<16x16xi1> to vector<16x16xi32>
    %106 = arith.sitofp %105 : vector<16x16xi32> to vector<16x16xf32>
    %107 = arith.addf %100, %106 : vector<16x16xf32>
    %108 = tpu.iota {dimensions = array<i32: 1>} : vector<1x16xi32>
    %c3_i32_14 = arith.constant 3 : i32
    %109 = vector.broadcast %c3_i32_14 : i32 to vector<1x16xi32>
    %110 = arith.shrsi %108, %109 : vector<1x16xi32>
    %c1_i32_15 = arith.constant 1 : i32
    %111 = vector.broadcast %c1_i32_15 : i32 to vector<1x16xi32>
    %112 = arith.andi %110, %111 : vector<1x16xi32>
    %c0_i32_16 = arith.constant 0 : i32
    %113 = vector.broadcast %c0_i32_16 : i32 to vector<1x16xi32>
    %114 = arith.cmpi eq, %112, %113 : vector<1x16xi32>
    %115 = vector.broadcast %17 : f32 to vector<1x16xf32>
    %116 = vector.broadcast %25 : f32 to vector<1x16xf32>
    %117 = arith.select %114, %115, %116 : vector<1x16xi1>, vector<1x16xf32>
    %c2_i32_17 = arith.constant 2 : i32
    %118 = vector.broadcast %c2_i32_17 : i32 to vector<1x16xi32>
    %119 = arith.shrsi %108, %118 : vector<1x16xi32>
    %c1_i32_18 = arith.constant 1 : i32
    %120 = vector.broadcast %c1_i32_18 : i32 to vector<1x16xi32>
    %121 = arith.andi %119, %120 : vector<1x16xi32>
    %c0_i32_19 = arith.constant 0 : i32
    %122 = vector.broadcast %c0_i32_19 : i32 to vector<1x16xi32>
    %123 = arith.cmpi eq, %121, %122 : vector<1x16xi32>
    %124 = vector.broadcast %19 : f32 to vector<1x16xf32>
    %125 = vector.broadcast %27 : f32 to vector<1x16xf32>
    %126 = arith.select %123, %124, %125 : vector<1x16xi1>, vector<1x16xf32>
    %127 = arith.mulf %117, %126 : vector<1x16xf32>
    %c1_i32_20 = arith.constant 1 : i32
    %128 = vector.broadcast %c1_i32_20 : i32 to vector<1x16xi32>
    %129 = arith.shrsi %108, %128 : vector<1x16xi32>
    %c1_i32_21 = arith.constant 1 : i32
    %130 = vector.broadcast %c1_i32_21 : i32 to vector<1x16xi32>
    %131 = arith.andi %129, %130 : vector<1x16xi32>
    %c0_i32_22 = arith.constant 0 : i32
    %132 = vector.broadcast %c0_i32_22 : i32 to vector<1x16xi32>
    %133 = arith.cmpi eq, %131, %132 : vector<1x16xi32>
    %134 = vector.broadcast %21 : f32 to vector<1x16xf32>
    %135 = vector.broadcast %29 : f32 to vector<1x16xf32>
    %136 = arith.select %133, %134, %135 : vector<1x16xi1>, vector<1x16xf32>
    %137 = arith.mulf %127, %136 : vector<1x16xf32>
    %c0_i32_23 = arith.constant 0 : i32
    %138 = vector.broadcast %c0_i32_23 : i32 to vector<1x16xi32>
    %139 = arith.shrsi %108, %138 : vector<1x16xi32>
    %c1_i32_24 = arith.constant 1 : i32
    %140 = vector.broadcast %c1_i32_24 : i32 to vector<1x16xi32>
    %141 = arith.andi %139, %140 : vector<1x16xi32>
    %c0_i32_25 = arith.constant 0 : i32
    %142 = vector.broadcast %c0_i32_25 : i32 to vector<1x16xi32>
    %143 = arith.cmpi eq, %141, %142 : vector<1x16xi32>
    %144 = vector.broadcast %23 : f32 to vector<1x16xf32>
    %145 = vector.broadcast %31 : f32 to vector<1x16xf32>
    %146 = arith.select %143, %144, %145 : vector<1x16xi1>, vector<1x16xf32>
    %147 = arith.mulf %137, %146 : vector<1x16xf32>
    %c0_26 = arith.constant 0 : index
    %c0_27 = arith.constant 0 : index
    %148 = vector.load %arg2[%c0_26, %c0_27] : memref<10x16xf32, #tpu.memory_space<vmem>>, vector<1x16xf32>
    %c5_28 = arith.constant 5 : index
    %c0_29 = arith.constant 0 : index
    %149 = vector.load %arg2[%c5_28, %c0_29] : memref<10x16xf32, #tpu.memory_space<vmem>>, vector<1x16xf32>
    %150 = arith.mulf %147, %148 : vector<1x16xf32>
    %151 = arith.mulf %147, %149 : vector<1x16xf32>
    %cst_30 = arith.constant dense<0.000000e+00> : vector<1x16xf32>
    %152 = tpu.matmul %150, %107, %cst_30 {dimension_numbers = #tpu.dot_dimension_numbers<[1], [0], [0], [1], [0, 0, 1, 1], [], []>, precision = #tpu.contract_precision<fp32>} : vector<1x16xf32>, vector<16x16xf32>, vector<1x16xf32> -> vector<1x16xf32>
    %cst_31 = arith.constant dense<0.000000e+00> : vector<1x16xf32>
    %153 = tpu.matmul %151, %107, %cst_31 {dimension_numbers = #tpu.dot_dimension_numbers<[1], [0], [0], [1], [0, 0, 1, 1], [], []>, precision = #tpu.contract_precision<fp32>} : vector<1x16xf32>, vector<16x16xf32>, vector<1x16xf32> -> vector<1x16xf32>
    %c1_32 = arith.constant 1 : index
    %c0_33 = arith.constant 0 : index
    %154 = vector.load %arg2[%c1_32, %c0_33] : memref<10x16xf32, #tpu.memory_space<vmem>>, vector<1x16xf32>
    %c6_34 = arith.constant 6 : index
    %c0_35 = arith.constant 0 : index
    %155 = vector.load %arg2[%c6_34, %c0_35] : memref<10x16xf32, #tpu.memory_space<vmem>>, vector<1x16xf32>
    %156 = arith.mulf %152, %154 : vector<1x16xf32>
    %157 = arith.mulf %153, %155 : vector<1x16xf32>
    %158 = arith.subf %156, %157 : vector<1x16xf32>
    %159 = arith.mulf %152, %155 : vector<1x16xf32>
    %160 = arith.mulf %153, %154 : vector<1x16xf32>
    %161 = arith.addf %159, %160 : vector<1x16xf32>
    %cst_36 = arith.constant dense<0.000000e+00> : vector<1x16xf32>
    %162 = tpu.matmul %158, %107, %cst_36 {dimension_numbers = #tpu.dot_dimension_numbers<[1], [0], [0], [1], [0, 0, 1, 1], [], []>, precision = #tpu.contract_precision<fp32>} : vector<1x16xf32>, vector<16x16xf32>, vector<1x16xf32> -> vector<1x16xf32>
    %cst_37 = arith.constant dense<0.000000e+00> : vector<1x16xf32>
    %163 = tpu.matmul %161, %107, %cst_37 {dimension_numbers = #tpu.dot_dimension_numbers<[1], [0], [0], [1], [0, 0, 1, 1], [], []>, precision = #tpu.contract_precision<fp32>} : vector<1x16xf32>, vector<16x16xf32>, vector<1x16xf32> -> vector<1x16xf32>
    %c2_38 = arith.constant 2 : index
    %c0_39 = arith.constant 0 : index
    %164 = vector.load %arg2[%c2_38, %c0_39] : memref<10x16xf32, #tpu.memory_space<vmem>>, vector<1x16xf32>
    %c7_40 = arith.constant 7 : index
    %c0_41 = arith.constant 0 : index
    %165 = vector.load %arg2[%c7_40, %c0_41] : memref<10x16xf32, #tpu.memory_space<vmem>>, vector<1x16xf32>
    %166 = arith.mulf %162, %164 : vector<1x16xf32>
    %167 = arith.mulf %163, %165 : vector<1x16xf32>
    %168 = arith.subf %166, %167 : vector<1x16xf32>
    %169 = arith.mulf %162, %165 : vector<1x16xf32>
    %170 = arith.mulf %163, %164 : vector<1x16xf32>
    %171 = arith.addf %169, %170 : vector<1x16xf32>
    %cst_42 = arith.constant dense<0.000000e+00> : vector<1x16xf32>
    %172 = tpu.matmul %168, %107, %cst_42 {dimension_numbers = #tpu.dot_dimension_numbers<[1], [0], [0], [1], [0, 0, 1, 1], [], []>, precision = #tpu.contract_precision<fp32>} : vector<1x16xf32>, vector<16x16xf32>, vector<1x16xf32> -> vector<1x16xf32>
    %cst_43 = arith.constant dense<0.000000e+00> : vector<1x16xf32>
    %173 = tpu.matmul %171, %107, %cst_43 {dimension_numbers = #tpu.dot_dimension_numbers<[1], [0], [0], [1], [0, 0, 1, 1], [], []>, precision = #tpu.contract_precision<fp32>} : vector<1x16xf32>, vector<16x16xf32>, vector<1x16xf32> -> vector<1x16xf32>
    %c3_44 = arith.constant 3 : index
    %c0_45 = arith.constant 0 : index
    %174 = vector.load %arg2[%c3_44, %c0_45] : memref<10x16xf32, #tpu.memory_space<vmem>>, vector<1x16xf32>
    %c8_46 = arith.constant 8 : index
    %c0_47 = arith.constant 0 : index
    %175 = vector.load %arg2[%c8_46, %c0_47] : memref<10x16xf32, #tpu.memory_space<vmem>>, vector<1x16xf32>
    %176 = arith.mulf %172, %174 : vector<1x16xf32>
    %177 = arith.mulf %173, %175 : vector<1x16xf32>
    %178 = arith.subf %176, %177 : vector<1x16xf32>
    %179 = arith.mulf %172, %175 : vector<1x16xf32>
    %180 = arith.mulf %173, %174 : vector<1x16xf32>
    %181 = arith.addf %179, %180 : vector<1x16xf32>
    %cst_48 = arith.constant dense<0.000000e+00> : vector<1x16xf32>
    %182 = tpu.matmul %178, %107, %cst_48 {dimension_numbers = #tpu.dot_dimension_numbers<[1], [0], [0], [1], [0, 0, 1, 1], [], []>, precision = #tpu.contract_precision<fp32>} : vector<1x16xf32>, vector<16x16xf32>, vector<1x16xf32> -> vector<1x16xf32>
    %cst_49 = arith.constant dense<0.000000e+00> : vector<1x16xf32>
    %183 = tpu.matmul %181, %107, %cst_49 {dimension_numbers = #tpu.dot_dimension_numbers<[1], [0], [0], [1], [0, 0, 1, 1], [], []>, precision = #tpu.contract_precision<fp32>} : vector<1x16xf32>, vector<16x16xf32>, vector<1x16xf32> -> vector<1x16xf32>
    %c4_50 = arith.constant 4 : index
    %c0_51 = arith.constant 0 : index
    %184 = vector.load %arg2[%c4_50, %c0_51] : memref<10x16xf32, #tpu.memory_space<vmem>>, vector<1x16xf32>
    %c9_52 = arith.constant 9 : index
    %c0_53 = arith.constant 0 : index
    %185 = vector.load %arg2[%c9_52, %c0_53] : memref<10x16xf32, #tpu.memory_space<vmem>>, vector<1x16xf32>
    %186 = arith.mulf %182, %184 : vector<1x16xf32>
    %187 = arith.mulf %183, %185 : vector<1x16xf32>
    %188 = arith.subf %186, %187 : vector<1x16xf32>
    %189 = arith.mulf %182, %185 : vector<1x16xf32>
    %190 = arith.mulf %183, %184 : vector<1x16xf32>
    %191 = arith.addf %189, %190 : vector<1x16xf32>
    %cst_54 = arith.constant dense<0.000000e+00> : vector<1x16xf32>
    %192 = tpu.matmul %188, %107, %cst_54 {dimension_numbers = #tpu.dot_dimension_numbers<[1], [0], [0], [1], [0, 0, 1, 1], [], []>, precision = #tpu.contract_precision<fp32>} : vector<1x16xf32>, vector<16x16xf32>, vector<1x16xf32> -> vector<1x16xf32>
    %cst_55 = arith.constant dense<0.000000e+00> : vector<1x16xf32>
    %193 = tpu.matmul %191, %107, %cst_55 {dimension_numbers = #tpu.dot_dimension_numbers<[1], [0], [0], [1], [0, 0, 1, 1], [], []>, precision = #tpu.contract_precision<fp32>} : vector<1x16xf32>, vector<16x16xf32>, vector<1x16xf32> -> vector<1x16xf32>
    %194 = arith.mulf %192, %192 : vector<1x16xf32>
    %195 = arith.mulf %193, %193 : vector<1x16xf32>
    %196 = arith.addf %194, %195 : vector<1x16xf32>
    %197 = tpu.iota {dimensions = array<i32: 0>} : vector<16x128xi32>
    %198 = tpu.iota {dimensions = array<i32: 1>} : vector<16x128xi32>
    %cst_56 = arith.constant 0.000000e+00 : f32
    %199 = vector.broadcast %cst_56 : f32 to vector<16x128xf32>
    %c3_i32_57 = arith.constant 3 : i32
    %200 = vector.broadcast %c3_i32_57 : i32 to vector<16x128xi32>
    %201 = arith.shrsi %197, %200 : vector<16x128xi32>
    %c1_i32_58 = arith.constant 1 : i32
    %202 = vector.broadcast %c1_i32_58 : i32 to vector<16x128xi32>
    %203 = arith.andi %201, %202 : vector<16x128xi32>
    %204 = arith.sitofp %203 : vector<16x128xi32> to vector<16x128xf32>
    %cst_59 = arith.constant 2.000000e+00 : f32
    %205 = vector.broadcast %cst_59 : f32 to vector<16x128xf32>
    %206 = arith.mulf %205, %204 : vector<16x128xf32>
    %cst_60 = arith.constant 1.000000e+00 : f32
    %207 = vector.broadcast %cst_60 : f32 to vector<16x128xf32>
    %208 = arith.subf %207, %206 : vector<16x128xf32>
    %c0_i32_61 = arith.constant 0 : i32
    %209 = vector.broadcast %c0_i32_61 : i32 to vector<16x128xi32>
    %210 = arith.cmpi eq, %198, %209 : vector<16x128xi32>
    %cst_62 = arith.constant 0.000000e+00 : f32
    %211 = vector.broadcast %cst_62 : f32 to vector<16x128xf32>
    %212 = arith.select %210, %208, %211 : vector<16x128xi1>, vector<16x128xf32>
    %213 = arith.addf %199, %212 : vector<16x128xf32>
    %c2_i32_63 = arith.constant 2 : i32
    %214 = vector.broadcast %c2_i32_63 : i32 to vector<16x128xi32>
    %215 = arith.shrsi %197, %214 : vector<16x128xi32>
    %c1_i32_64 = arith.constant 1 : i32
    %216 = vector.broadcast %c1_i32_64 : i32 to vector<16x128xi32>
    %217 = arith.andi %215, %216 : vector<16x128xi32>
    %218 = arith.sitofp %217 : vector<16x128xi32> to vector<16x128xf32>
    %cst_65 = arith.constant 2.000000e+00 : f32
    %219 = vector.broadcast %cst_65 : f32 to vector<16x128xf32>
    %220 = arith.mulf %219, %218 : vector<16x128xf32>
    %cst_66 = arith.constant 1.000000e+00 : f32
    %221 = vector.broadcast %cst_66 : f32 to vector<16x128xf32>
    %222 = arith.subf %221, %220 : vector<16x128xf32>
    %c1_i32_67 = arith.constant 1 : i32
    %223 = vector.broadcast %c1_i32_67 : i32 to vector<16x128xi32>
    %224 = arith.cmpi eq, %198, %223 : vector<16x128xi32>
    %cst_68 = arith.constant 0.000000e+00 : f32
    %225 = vector.broadcast %cst_68 : f32 to vector<16x128xf32>
    %226 = arith.select %224, %222, %225 : vector<16x128xi1>, vector<16x128xf32>
    %227 = arith.addf %213, %226 : vector<16x128xf32>
    %c1_i32_69 = arith.constant 1 : i32
    %228 = vector.broadcast %c1_i32_69 : i32 to vector<16x128xi32>
    %229 = arith.shrsi %197, %228 : vector<16x128xi32>
    %c1_i32_70 = arith.constant 1 : i32
    %230 = vector.broadcast %c1_i32_70 : i32 to vector<16x128xi32>
    %231 = arith.andi %229, %230 : vector<16x128xi32>
    %232 = arith.sitofp %231 : vector<16x128xi32> to vector<16x128xf32>
    %cst_71 = arith.constant 2.000000e+00 : f32
    %233 = vector.broadcast %cst_71 : f32 to vector<16x128xf32>
    %234 = arith.mulf %233, %232 : vector<16x128xf32>
    %cst_72 = arith.constant 1.000000e+00 : f32
    %235 = vector.broadcast %cst_72 : f32 to vector<16x128xf32>
    %236 = arith.subf %235, %234 : vector<16x128xf32>
    %c2_i32_73 = arith.constant 2 : i32
    %237 = vector.broadcast %c2_i32_73 : i32 to vector<16x128xi32>
    %238 = arith.cmpi eq, %198, %237 : vector<16x128xi32>
    %cst_74 = arith.constant 0.000000e+00 : f32
    %239 = vector.broadcast %cst_74 : f32 to vector<16x128xf32>
    %240 = arith.select %238, %236, %239 : vector<16x128xi1>, vector<16x128xf32>
    %241 = arith.addf %227, %240 : vector<16x128xf32>
    %c0_i32_75 = arith.constant 0 : i32
    %242 = vector.broadcast %c0_i32_75 : i32 to vector<16x128xi32>
    %243 = arith.shrsi %197, %242 : vector<16x128xi32>
    %c1_i32_76 = arith.constant 1 : i32
    %244 = vector.broadcast %c1_i32_76 : i32 to vector<16x128xi32>
    %245 = arith.andi %243, %244 : vector<16x128xi32>
    %246 = arith.sitofp %245 : vector<16x128xi32> to vector<16x128xf32>
    %cst_77 = arith.constant 2.000000e+00 : f32
    %247 = vector.broadcast %cst_77 : f32 to vector<16x128xf32>
    %248 = arith.mulf %247, %246 : vector<16x128xf32>
    %cst_78 = arith.constant 1.000000e+00 : f32
    %249 = vector.broadcast %cst_78 : f32 to vector<16x128xf32>
    %250 = arith.subf %249, %248 : vector<16x128xf32>
    %c3_i32_79 = arith.constant 3 : i32
    %251 = vector.broadcast %c3_i32_79 : i32 to vector<16x128xi32>
    %252 = arith.cmpi eq, %198, %251 : vector<16x128xi32>
    %cst_80 = arith.constant 0.000000e+00 : f32
    %253 = vector.broadcast %cst_80 : f32 to vector<16x128xf32>
    %254 = arith.select %252, %250, %253 : vector<16x128xi1>, vector<16x128xf32>
    %255 = arith.addf %241, %254 : vector<16x128xf32>
    %cst_81 = arith.constant dense<0.000000e+00> : vector<1x128xf32>
    %256 = tpu.matmul %196, %255, %cst_81 {dimension_numbers = #tpu.dot_dimension_numbers<[1], [0], [0], [1], [0, 0, 1, 1], [], []>, precision = #tpu.contract_precision<fp32>} : vector<1x16xf32>, vector<16x128xf32>, vector<1x128xf32> -> vector<1x128xf32>
    %c0_82 = arith.constant 0 : index
    %c0_83 = arith.constant 0 : index
    %c0_84 = arith.constant 0 : index
    %257 = vector.load %arg3[%c0_82, %c0_83, %c0_84] : memref<1x1x128xf32, #tpu.memory_space<vmem>>, vector<1x1x128xf32>
    %258 = vector.shape_cast %257 : vector<1x1x128xf32> to vector<1x128xf32>
    %259 = vector.shape_cast %256 : vector<1x128xf32> to vector<1x1x128xf32>
    tpu.vector_store %arg3[%c0_82, %c0_83, %c0_84], %259 {strides = array<i32>} : memref<1x1x128xf32, #tpu.memory_space<vmem>>, vector<1x1x128xf32>,
    return
  }
  func.func @transform_0(%arg0: i32) -> (i32, i32) {
    %c0_i32 = arith.constant 0 : i32
    %c0_i32_0 = arith.constant 0 : i32
    %c0_i32_1 = arith.constant 0 : i32
    return %c0_i32, %c0_i32_0 : i32, i32
  }
  func.func @transform_1(%arg0: i32) -> (i32, i32) {
    %c0_i32 = arith.constant 0 : i32
    %c0_i32_0 = arith.constant 0 : i32
    %c0_i32_1 = arith.constant 0 : i32
    return %c0_i32, %c0_i32_0 : i32, i32
  }
  func.func @transform_2(%arg0: i32) -> (i32, i32, i32) {
    %c0_i32 = arith.constant 0 : i32
    %c0_i32_0 = arith.constant 0 : i32
    %c0_i32_1 = arith.constant 0 : i32
    return %arg0, %c0_i32, %c0_i32_0 : i32, i32, i32
  }
}

</mosaic_0001>

<llo_original>
// kernel: _forward_batch.1
$region0: #{_forward_batch.1}
  #allocation0 [shape = 'u32[]', space=smem, size = 0x4, offset = 0x4, fixed_abs, tag = 'smem constant byte address 0x4 - core index']
  #allocation1 [shape = 'u32[72,128]{1,0:T(1,128)}', space=vmem, size = 0x9000, scoped, tag = 'internal scratch']
  %s0 = inlined_call_operand.vmem [shape: f32[1,16], index: 0, kind: input, shape index: {}]
  %s1 = inlined_call_operand.hbm [shape: f32[10,16], index: 1, kind: input, shape index: {}]
  %s2 = inlined_call_operand.vmem [shape: f32[1,1,128], index: 2, kind: output, shape index: {}]
  %s3 = sld [smem:[#allocation0]]
  $region26: #{_forward_batch.1} parent=0
    _
  %s5 = ssub.s32 1, %s3
  %s6 = scalar_select 0, %s5, %s3
  $region1: #{_forward_batch.1} parent=0
    #allocation2 [shape = 'u8[512]{0}', space=smem, size = 0x200, scoped, tag = 'input window, operand 0, single buffered']
    #allocation3 [shape = 's32[1]{0}', space=sflag, size = 0x4, scoped, tag = 'scoped memory for _forward_batch.1']
    #allocation4 [shape = 's32[1]{0}', space=sflag, size = 0x4, scoped, tag = 'scoped memory for _forward_batch.1']
    #allocation5 [shape = 'u8[8192]{0}', space=vmem, size = 0x2000, scoped, tag = 'input window, operand 1, single buffered']
    %7 = vsyncpa [#allocation4], 0
    %8 = vsyncpa [#allocation3], 0
    // Predicated region
    $region2: #{_forward_batch.1} parent=1 // pred_check
      _
    $region3: #{_forward_batch.1} parent=1 // pred_check_branch
      %10 = sbr.rel (0) target = $region5
    $region4: #{_forward_batch.1} parent=1 // pred_region
      %12 = vsyncadd [#allocation4], 0
      %s14 = sshll.u32 %s0, 4
      %s15 = int_to_ptr.vmem [resolvable:$true] %s14
      %17 = dma.vmem_to_smem %s15, 16, [#allocation2], [#allocation4]
    $region5: #{_forward_batch.1} parent=1 // pred_fallthru
      _
    // Predicated region
    $region6: #{_forward_batch.1} parent=1 // pred_check
      _
    $region7: #{_forward_batch.1} parent=1 // pred_check_branch
      %19 = sbr.rel (0) target = $region9
    $region8: #{_forward_batch.1} parent=1 // pred_region
      %21 = vsyncadd [#allocation3], 0
      %s22 = sshll.u32 %s1, 4
      %s23 = int_to_ptr.hbm [resolvable:$true] %s22
      %s24 = sshll.u32 [#allocation5], 4
      %s25 = int_to_ptr.vmem [resolvable:$true] %s24
      %30 = dma.hbm_to_vmem [thread:$0]  %s23, 256, %s25, [#allocation3], 128, 128, 8
    $region9: #{_forward_batch.1} parent=1 // pred_fallthru
      _
    // Predicated region
    $region10: #{_forward_batch.1} parent=1 // pred_check
      _
    $region11: #{_forward_batch.1} parent=1 // pred_check_branch
      %32 = sbr.rel (0) target = $region13
    $region12: #{_forward_batch.1} parent=1 // pred_region
      %34 = dma.done [#allocation4], 16
    $region13: #{_forward_batch.1} parent=1 // pred_fallthru
      _
    // Predicated region
    $region14: #{_forward_batch.1} parent=1 // pred_check
      _
    $region15: #{_forward_batch.1} parent=1 // pred_check_branch
      %36 = sbr.rel (0) target = $region17
    $region16: #{_forward_batch.1} parent=1 // pred_region
      %38 = dma.done [#allocation3], 256
    $region17: #{_forward_batch.1} parent=1 // pred_fallthru
      _
    %39 = sfence
    %s40 = smul.u32 0, 128
    %s41 = sld [smem:[#allocation2 + %s40]]
    %s42 = sadd.s32 %s40, 1
    %s43 = sld [smem:[#allocation2 + %s42]]
    %s44 = sadd.s32 %s40, 2
    %s45 = sld [smem:[#allocation2 + %s44]]
    %s46 = sadd.s32 %s40, 3
    %s47 = sld [smem:[#allocation2 + %s46]]
    %s48 = sadd.s32 %s40, 4
    %s49 = sld [smem:[#allocation2 + %s48]]
    %s50 = sadd.s32 %s40, 5
    %s51 = sld [smem:[#allocation2 + %s50]]
    %s52 = sadd.s32 %s40, 6
    %s53 = sld [smem:[#allocation2 + %s52]]
    %s54 = sadd.s32 %s40, 7
    %s55 = sld [smem:[#allocation2 + %s54]]
    %s56 = sadd.s32 %s40, 8
    %s57 = sld [smem:[#allocation2 + %s56]]
    %s58 = sadd.s32 %s40, 9
    %s59 = sld [smem:[#allocation2 + %s58]]
    %s60 = sadd.s32 %s40, 10
    %s61 = sld [smem:[#allocation2 + %s60]]
    %s62 = sadd.s32 %s40, 11
    %s63 = sld [smem:[#allocation2 + %s62]]
    %s64 = sadd.s32 %s40, 12
    %s65 = sld [smem:[#allocation2 + %s64]]
    %s66 = sadd.s32 %s40, 13
    %s67 = sld [smem:[#allocation2 + %s66]]
    %s68 = sadd.s32 %s40, 14
    %s69 = sld [smem:[#allocation2 + %s68]]
    %s70 = sadd.s32 %s40, 15
    %s71 = sld [smem:[#allocation2 + %s70]]
    %v72 = vlaneseq
    %v73 = vshrl.u32 %v72, 7
    %v74 = vadd.s32 %v73, 8
    %v75 = vlaneseq
    %v76 = vand.u32 %v75, 127
    %v77 = vand.u32 %v73, 3
    %v78 = vand.u32 %v74, 3
    %vm79 = vcmp.eq.s32.totalorder %v77, 0
    %vm80 = vcmp.eq.s32.totalorder %v78, 0
    %vm81 = vcmp.eq.s32.totalorder %v77, 1
    %vm82 = vcmp.eq.s32.totalorder %v78, 1
    %vm83 = vcmp.eq.s32.totalorder %v77, 2
    %vm84 = vcmp.eq.s32.totalorder %v78, 2
    %v85 = vstv %s45
    %v86 = vstv %s47
    %v87 = vsel %vm83, %v85, %v86
    %v88 = vsel %vm84, %v85, %v86
    %v89 = vstv %s43
    %v90 = vsel %vm81, %v89, %v87
    %v91 = vsel %vm82, %v89, %v88
    %v92 = vstv %s41
    %v93 = vsel %vm79, %v92, %v90
    %v94 = vsel %vm80, %v92, %v91
    %v95 = vstv %s53
    %v96 = vstv %s55
    %v97 = vsel %vm83, %v95, %v96
    %v98 = vsel %vm84, %v95, %v96
    %v99 = vstv %s51
    %v100 = vsel %vm81, %v99, %v97
    %v101 = vsel %vm82, %v99, %v98
    %v102 = vstv %s49
    %v103 = vsel %vm79, %v102, %v100
    %v104 = vsel %vm80, %v102, %v101
    %vm105 = vcmp.lt.s32.totalorder %v73, 4
    %vm106 = vcmp.lt.s32.totalorder %v74, 4
    %vm107 = vcmp.eq.s32.totalorder %v76, %v73
    %vm108 = vcmp.eq.s32.totalorder %v76, %v74
    %vm109 = vmand %vm105, %vm107
    %vm110 = vmand %vm106, %vm108
    %v111 = vsel %vm109, %v93, 0.0
    %v112 = vsel %vm110, %v94, 0.0
    %v113 = vadd.s32 %v73, 4
    %v114 = vadd.s32 %v74, 4
    %vm115 = vcmp.eq.s32.totalorder %v76, %v113
    %vm116 = vcmp.eq.s32.totalorder %v76, %v114
    %vm117 = vmand %vm105, %vm115
    %vm118 = vmand %vm106, %vm116
    %v119 = vsel %vm117, %v103, 0.0
    %v120 = vsel %vm118, %v104, 0.0
    %v121 = vadd.f32 %v111, %v119
    %v122 = vadd.f32 %v112, %v120
    %vm123 = vcmp.ge.s32.totalorder %v73, 4
    %vm124 = vcmp.ge.s32.totalorder %v74, 4
    %vm125 = vcmp.lt.s32.totalorder %v73, 8
    %vm126 = vcmp.lt.s32.totalorder %v74, 8
    %vm127 = vmand %vm123, %vm125
    %vm128 = vmand %vm124, %vm126
    %v129 = vsub.s32 %v73, 4
    %v130 = vsub.s32 %v74, 4
    %vm131 = vcmp.eq.s32.totalorder %v76, %v129
    %vm132 = vcmp.eq.s32.totalorder %v76, %v130
    %vm133 = vmand %vm127, %vm131
    %vm134 = vmand %vm128, %vm132
    %v135 = vsel %vm133, %v103, 0.0
    %v136 = vsel %vm134, %v104, 0.0
    %v137 = vadd.f32 %v121, %v135
    %v138 = vadd.f32 %v122, %v136
    %vm139 = vmand %vm127, %vm107
    %vm140 = vmand %vm128, %vm108
    %v141 = vsub.f32 0.0, %v93
    %v142 = vsub.f32 0.0, %v94
    %v143 = vsel %vm139, %v141, 0.0
    %v144 = vsel %vm140, %v142, 0.0
    %v145 = vadd.f32 %v137, %v143
    %v146 = vadd.f32 %v138, %v144
    %vm147 = vcmp.ge.s32.totalorder %v73, 8
    %vm148 = vcmp.ge.s32.totalorder %v74, 8
    %vm149 = vmand %vm147, %vm107
    %vm150 = vmand %vm148, %vm108
    %v151 = vsel %vm149, 1, 0
    %v152 = vsel %vm150, 1, 0
    %v153 = vcvt.s32.f32 %v151
    %v154 = vcvt.s32.f32 %v152
    %v155 = vadd.f32 %v145, %v153
    %v156 = vadd.f32 %v146, %v154
    %v157 = vshra.s32 %v76, 3
    %v158 = vand.u32 %v157, 1
    %vm159 = vcmp.eq.s32.totalorder %v158, 0
    %v160 = vstv %s57
    %v161 = vstv %s65
    %v162 = vsel %vm159, %v160, %v161
    %v163 = vshra.s32 %v76, 2
    %v164 = vand.u32 %v163, 1
    %vm165 = vcmp.eq.s32.totalorder %v164, 0
    %v166 = vstv %s59
    %v167 = vstv %s67
    %v168 = vsel %vm165, %v166, %v167
    %v169 = vmul.f32 %v162, %v168
    %v170 = vshra.s32 %v76, 1
    %v171 = vand.u32 %v170, 1
    %vm172 = vcmp.eq.s32.totalorder %v171, 0
    %v173 = vstv %s61
    %v174 = vstv %s69
    %v175 = vsel %vm172, %v173, %v174
    %v176 = vmul.f32 %v169, %v175
    %v177 = vand.u32 %v76, 1
    %vm178 = vcmp.eq.s32.totalorder %v177, 0
    %v179 = vstv %s63
    %v180 = vstv %s71
    %v181 = vsel %vm178, %v179, %v180
    %v182 = vmul.f32 %v176, %v181
    %v183 = vld [vmem:[#allocation5] sm:$0x1]
    %v184 = vld [vmem:[#allocation5 + $0x5] sm:$0x1]
    %v185 = vmul.f32 %v182, %v183
    %v186 = vmul.f32 %v182, %v184
    %vm187 = vcmask 130048
    %v189 = vsel %vm187, %v185, 0
    %191 = vmatpush.msra.mxu0 0.0
    %192 = vmatpush.msra.mxu0 0.0
    %193 = vmatpush.msra.mxu0 0.0
    %194 = vmatpush.msra.mxu0 0.0
    %195 = vmatpush.msra.mxu0 0.0
    %196 = vmatpush.msra.mxu0 0.0
    %197 = vmatpush.msra.mxu0 0.0
    %198 = vmatpush.msra.mxu0 0.0
    %199 = vmatpush.msra.mxu0 0.0
    %200 = vmatpush.msra.mxu0 0.0
    %201 = vmatpush.msra.mxu0 0.0
    %202 = vmatpush.msra.mxu0 0.0
    %203 = vmatpush.msra.mxu0 0.0
    %204 = vmatpush.msra.mxu0 0.0
    %v205 = vand.u32 %v156, 4294901760
    %206 = vmatpush.msra.mxu0 %v205
    %v207 = vand.u32 %v155, 4294901760
    %208 = vmatpush.msra.mxu0 %v207
    %v209 = vand.u32 %v189, 4294901760
    %v210 = vsub.f32 %v189, %v209
    %v211 = vand.u32 %v210, 4294901760
    %v212 = vsub.f32 %v210, %v211
    %v213 = vand.u32 %v212, 4294901760
    %214 = vmatmul.f32.gmra.mxu0 %v213
    %v215 = vpop.f32.mrf.mxu0
    %v216 = vadd.f32 0.0, %v215
    %217 = vdwg.mxu0
    %218 = vmatpush.msra.mxu0 0.0
    %219 = vmatpush.msra.mxu0 0.0
    %220 = vmatpush.msra.mxu0 0.0
    %221 = vmatpush.msra.mxu0 0.0
    %222 = vmatpush.msra.mxu0 0.0
    %223 = vmatpush.msra.mxu0 0.0
    %224 = vmatpush.msra.mxu0 0.0
    %225 = vmatpush.msra.mxu0 0.0
    %226 = vmatpush.msra.mxu0 0.0
    %227 = vmatpush.msra.mxu0 0.0
    %228 = vmatpush.msra.mxu0 0.0
    %229 = vmatpush.msra.mxu0 0.0
    %230 = vmatpush.msra.mxu0 0.0
    %231 = vmatpush.msra.mxu0 0.0
    %v232 = vand.u32 %v156, 4294901760
    %v233 = vsub.f32 %v156, %v232
    %v234 = vand.u32 %v233, 4294901760
    %v235 = vsub.f32 %v233, %v234
    %v236 = vand.u32 %v235, 4294901760
    %237 = vmatpush.msra.mxu0 %v236
    %v238 = vand.u32 %v155, 4294901760
    %v239 = vsub.f32 %v155, %v238
    %v240 = vand.u32 %v239, 4294901760
    %v241 = vsub.f32 %v239, %v240
    %v242 = vand.u32 %v241, 4294901760
    %243 = vmatpush.msra.mxu0 %v242
    %v244 = vand.u32 %v189, 4294901760
    %245 = vmatmul.f32.gmra.mxu0 %v244
    %v246 = vpop.f32.mrf.mxu0
    %v247 = vadd.f32 %v216, %v246
    %248 = vdwg.mxu0
    %249 = vmatpush.msra.mxu0 0.0
    %250 = vmatpush.msra.mxu0 0.0
    %251 = vmatpush.msra.mxu0 0.0
    %252 = vmatpush.msra.mxu0 0.0
    %253 = vmatpush.msra.mxu0 0.0
    %254 = vmatpush.msra.mxu0 0.0
    %255 = vmatpush.msra.mxu0 0.0
    %256 = vmatpush.msra.mxu0 0.0
    %257 = vmatpush.msra.mxu0 0.0
    %258 = vmatpush.msra.mxu0 0.0
    %259 = vmatpush.msra.mxu0 0.0
    %260 = vmatpush.msra.mxu0 0.0
    %261 = vmatpush.msra.mxu0 0.0
    %262 = vmatpush.msra.mxu0 0.0
    %v263 = vand.u32 %v156, 4294901760
    %v264 = vsub.f32 %v156, %v263
    %265 = vmatpush.msra.mxu0 %v264
    %v266 = vand.u32 %v155, 4294901760
    %v267 = vsub.f32 %v155, %v266
    %268 = vmatpush.msra.mxu0 %v267
    %v269 = vand.u32 %v189, 4294901760
    %v270 = vsub.f32 %v189, %v269
    %271 = vmatmul.f32.gmra.mxu0 %v270
    %v272 = vpop.f32.mrf.mxu0
    %v273 = vadd.f32 %v247, %v272
    %274 = vdwg.mxu0
    %275 = vmatpush.msra.mxu0 0.0
    %276 = vmatpush.msra.mxu0 0.0
    %277 = vmatpush.msra.mxu0 0.0
    %278 = vmatpush.msra.mxu0 0.0
    %279 = vmatpush.msra.mxu0 0.0
    %280 = vmatpush.msra.mxu0 0.0
    %281 = vmatpush.msra.mxu0 0.0
    %282 = vmatpush.msra.mxu0 0.0
    %283 = vmatpush.msra.mxu0 0.0
    %284 = vmatpush.msra.mxu0 0.0
    %285 = vmatpush.msra.mxu0 0.0
    %286 = vmatpush.msra.mxu0 0.0
    %287 = vmatpush.msra.mxu0 0.0
    %288 = vmatpush.msra.mxu0 0.0
    %v289 = vand.u32 %v156, 4294901760
    %290 = vmatpush.msra.mxu0 %v289
    %v291 = vand.u32 %v155, 4294901760
    %292 = vmatpush.msra.mxu0 %v291
    %v293 = vand.u32 %v189, 4294901760
    %v294 = vsub.f32 %v189, %v293
    %v295 = vand.u32 %v294, 4294901760
    %296 = vmatmul.f32.gmra.mxu0 %v295
    %v297 = vpop.f32.mrf.mxu0
    %v298 = vadd.f32 %v273, %v297
    %299 = vdwg.mxu0
    %300 = vmatpush.msra.mxu0 0.0
    %301 = vmatpush.msra.mxu0 0.0
    %302 = vmatpush.msra.mxu0 0.0
    %303 = vmatpush.msra.mxu0 0.0
    %304 = vmatpush.msra.mxu0 0.0
    %305 = vmatpush.msra.mxu0 0.0
    %306 = vmatpush.msra.mxu0 0.0
    %307 = vmatpush.msra.mxu0 0.0
    %308 = vmatpush.msra.mxu0 0.0
    %309 = vmatpush.msra.mxu0 0.0
    %310 = vmatpush.msra.mxu0 0.0
    %311 = vmatpush.msra.mxu0 0.0
    %312 = vmatpush.msra.mxu0 0.0
    %313 = vmatpush.msra.mxu0 0.0
    %v314 = vand.u32 %v156, 4294901760
    %v315 = vsub.f32 %v156, %v314
    %v316 = vand.u32 %v315, 4294901760
    %317 = vmatpush.msra.mxu0 %v316
    %v318 = vand.u32 %v155, 4294901760
    %v319 = vsub.f32 %v155, %v318
    %v320 = vand.u32 %v319, 4294901760
    %321 = vmatpush.msra.mxu0 %v320
    %v322 = vand.u32 %v189, 4294901760
    %323 = vmatmul.f32.gmra.mxu0 %v322
    %v324 = vpop.f32.mrf.mxu0
    %v325 = vadd.f32 %v298, %v324
    %326 = vdwg.mxu0
    %327 = vmatpush.msra.mxu0 0.0
    %328 = vmatpush.msra.mxu0 0.0
    %329 = vmatpush.msra.mxu0 0.0
    %330 = vmatpush.msra.mxu0 0.0
    %331 = vmatpush.msra.mxu0 0.0
    %332 = vmatpush.msra.mxu0 0.0
    %333 = vmatpush.msra.mxu0 0.0
    %334 = vmatpush.msra.mxu0 0.0
    %335 = vmatpush.msra.mxu0 0.0
    %336 = vmatpush.msra.mxu0 0.0
    %337 = vmatpush.msra.mxu0 0.0
    %338 = vmatpush.msra.mxu0 0.0
    %339 = vmatpush.msra.mxu0 0.0
    %340 = vmatpush.msra.mxu0 0.0
    %v341 = vand.u32 %v156, 4294901760
    %342 = vmatpush.msra.mxu0 %v341
    %v343 = vand.u32 %v155, 4294901760
    %344 = vmatpush.msra.mxu0 %v343
    %v345 = vand.u32 %v189, 4294901760
    %346 = vmatmul.f32.gmra.mxu0 %v345
    %v347 = vpop.f32.mrf.mxu0
    %v348 = vadd.f32 %v325, %v347
    %349 = vdwg.mxu0
    %v351 = vsel %vm187, %v186, 0
    %353 = vmatpush.msra.mxu0 0.0
    %354 = vmatpush.msra.mxu0 0.0
    %355 = vmatpush.msra.mxu0 0.0
    %356 = vmatpush.msra.mxu0 0.0
    %357 = vmatpush.msra.mxu0 0.0
    %358 = vmatpush.msra.mxu0 0.0
    %359 = vmatpush.msra.mxu0 0.0
    %360 = vmatpush.msra.mxu0 0.0
    %361 = vmatpush.msra.mxu0 0.0
    %362 = vmatpush.msra.mxu0 0.0
    %363 = vmatpush.msra.mxu0 0.0
    %364 = vmatpush.msra.mxu0 0.0
    %365 = vmatpush.msra.mxu0 0.0
    %366 = vmatpush.msra.mxu0 0.0
    %v367 = vand.u32 %v156, 4294901760
    %368 = vmatpush.msra.mxu0 %v367
    %v369 = vand.u32 %v155, 4294901760
    %370 = vmatpush.msra.mxu0 %v369
    %v371 = vand.u32 %v351, 4294901760
    %v372 = vsub.f32 %v351, %v371
    %v373 = vand.u32 %v372, 4294901760
    %v374 = vsub.f32 %v372, %v373
    %v375 = vand.u32 %v374, 4294901760
    %376 = vmatmul.f32.gmra.mxu0 %v375
    %v377 = vpop.f32.mrf.mxu0
    %v378 = vadd.f32 0.0, %v377
    %379 = vdwg.mxu0
    %380 = vmatpush.msra.mxu0 0.0
    %381 = vmatpush.msra.mxu0 0.0
    %382 = vmatpush.msra.mxu0 0.0
    %383 = vmatpush.msra.mxu0 0.0
    %384 = vmatpush.msra.mxu0 0.0
    %385 = vmatpush.msra.mxu0 0.0
    %386 = vmatpush.msra.mxu0 0.0
    %387 = vmatpush.msra.mxu0 0.0
    %388 = vmatpush.msra.mxu0 0.0
    %389 = vmatpush.msra.mxu0 0.0
    %390 = vmatpush.msra.mxu0 0.0
    %391 = vmatpush.msra.mxu0 0.0
    %392 = vmatpush.msra.mxu0 0.0
    %393 = vmatpush.msra.mxu0 0.0
    %v394 = vand.u32 %v156, 4294901760
    %v395 = vsub.f32 %v156, %v394
    %v396 = vand.u32 %v395, 4294901760
    %v397 = vsub.f32 %v395, %v396
    %v398 = vand.u32 %v397, 4294901760
    %399 = vmatpush.msra.mxu0 %v398
    %v400 = vand.u32 %v155, 4294901760
    %v401 = vsub.f32 %v155, %v400
    %v402 = vand.u32 %v401, 4294901760
    %v403 = vsub.f32 %v401, %v402
    %v404 = vand.u32 %v403, 4294901760
    %405 = vmatpush.msra.mxu0 %v404
    %v406 = vand.u32 %v351, 4294901760
    %407 = vmatmul.f32.gmra.mxu0 %v406
    %v408 = vpop.f32.mrf.mxu0
    %v409 = vadd.f32 %v378, %v408
    %410 = vdwg.mxu0
    %411 = vmatpush.msra.mxu0 0.0
    %412 = vmatpush.msra.mxu0 0.0
    %413 = vmatpush.msra.mxu0 0.0
    %414 = vmatpush.msra.mxu0 0.0
    %415 = vmatpush.msra.mxu0 0.0
    %416 = vmatpush.msra.mxu0 0.0
    %417 = vmatpush.msra.mxu0 0.0
    %418 = vmatpush.msra.mxu0 0.0
    %419 = vmatpush.msra.mxu0 0.0
    %420 = vmatpush.msra.mxu0 0.0
    %421 = vmatpush.msra.mxu0 0.0
    %422 = vmatpush.msra.mxu0 0.0
    %423 = vmatpush.msra.mxu0 0.0
    %424 = vmatpush.msra.mxu0 0.0
    %v425 = vand.u32 %v156, 4294901760
    %v426 = vsub.f32 %v156, %v425
    %427 = vmatpush.msra.mxu0 %v426
    %v428 = vand.u32 %v155, 4294901760
    %v429 = vsub.f32 %v155, %v428
    %430 = vmatpush.msra.mxu0 %v429
    %v431 = vand.u32 %v351, 4294901760
    %v432 = vsub.f32 %v351, %v431
    %433 = vmatmul.f32.gmra.mxu0 %v432
    %v434 = vpop.f32.mrf.mxu0
    %v435 = vadd.f32 %v409, %v434
    %436 = vdwg.mxu0
    %437 = vmatpush.msra.mxu0 0.0
    %438 = vmatpush.msra.mxu0 0.0
    %439 = vmatpush.msra.mxu0 0.0
    %440 = vmatpush.msra.mxu0 0.0
    %441 = vmatpush.msra.mxu0 0.0
    %442 = vmatpush.msra.mxu0 0.0
    %443 = vmatpush.msra.mxu0 0.0
    %444 = vmatpush.msra.mxu0 0.0
    %445 = vmatpush.msra.mxu0 0.0
    %446 = vmatpush.msra.mxu0 0.0
    %447 = vmatpush.msra.mxu0 0.0
    %448 = vmatpush.msra.mxu0 0.0
    %449 = vmatpush.msra.mxu0 0.0
    %450 = vmatpush.msra.mxu0 0.0
    %v451 = vand.u32 %v156, 4294901760
    %452 = vmatpush.msra.mxu0 %v451
    %v453 = vand.u32 %v155, 4294901760
    %454 = vmatpush.msra.mxu0 %v453
    %v455 = vand.u32 %v351, 4294901760
    %v456 = vsub.f32 %v351, %v455
    %v457 = vand.u32 %v456, 4294901760
    %458 = vmatmul.f32.gmra.mxu0 %v457
    %v459 = vpop.f32.mrf.mxu0
    %v460 = vadd.f32 %v435, %v459
    %461 = vdwg.mxu0
    %462 = vmatpush.msra.mxu0 0.0
    %463 = vmatpush.msra.mxu0 0.0
    %464 = vmatpush.msra.mxu0 0.0
    %465 = vmatpush.msra.mxu0 0.0
    %466 = vmatpush.msra.mxu0 0.0
    %467 = vmatpush.msra.mxu0 0.0
    %468 = vmatpush.msra.mxu0 0.0
    %469 = vmatpush.msra.mxu0 0.0
    %470 = vmatpush.msra.mxu0 0.0
    %471 = vmatpush.msra.mxu0 0.0
    %472 = vmatpush.msra.mxu0 0.0
    %473 = vmatpush.msra.mxu0 0.0
    %474 = vmatpush.msra.mxu0 0.0
    %475 = vmatpush.msra.mxu0 0.0
    %v476 = vand.u32 %v156, 4294901760
    %v477 = vsub.f32 %v156, %v476
    %v478 = vand.u32 %v477, 4294901760
    %479 = vmatpush.msra.mxu0 %v478
    %v480 = vand.u32 %v155, 4294901760
    %v481 = vsub.f32 %v155, %v480
    %v482 = vand.u32 %v481, 4294901760
    %483 = vmatpush.msra.mxu0 %v482
    %v484 = vand.u32 %v351, 4294901760
    %485 = vmatmul.f32.gmra.mxu0 %v484
    %v486 = vpop.f32.mrf.mxu0
    %v487 = vadd.f32 %v460, %v486
    %488 = vdwg.mxu0
    %489 = vmatpush.msra.mxu0 0.0
    %490 = vmatpush.msra.mxu0 0.0
    %491 = vmatpush.msra.mxu0 0.0
    %492 = vmatpush.msra.mxu0 0.0
    %493 = vmatpush.msra.mxu0 0.0
    %494 = vmatpush.msra.mxu0 0.0
    %495 = vmatpush.msra.mxu0 0.0
    %496 = vmatpush.msra.mxu0 0.0
    %497 = vmatpush.msra.mxu0 0.0
    %498 = vmatpush.msra.mxu0 0.0
    %499 = vmatpush.msra.mxu0 0.0
    %500 = vmatpush.msra.mxu0 0.0
    %501 = vmatpush.msra.mxu0 0.0
    %502 = vmatpush.msra.mxu0 0.0
    %v503 = vand.u32 %v156, 4294901760
    %504 = vmatpush.msra.mxu0 %v503
    %v505 = vand.u32 %v155, 4294901760
    %506 = vmatpush.msra.mxu0 %v505
    %v507 = vand.u32 %v351, 4294901760
    %508 = vmatmul.f32.gmra.mxu0 %v507
    %v509 = vpop.f32.mrf.mxu0
    %v510 = vadd.f32 %v487, %v509
    %511 = vdwg.mxu0
    %v512 = vld [vmem:[#allocation5 + $0x1] sm:$0x1]
    %v513 = vld [vmem:[#allocation5 + $0x6] sm:$0x1]
    %v514 = vmul.f32 %v348, %v512
    %v515 = vmul.f32 %v510, %v513
    %v516 = vsub.f32 %v514, %v515
    %v517 = vmul.f32 %v348, %v513
    %v518 = vmul.f32 %v510, %v512
    %v519 = vadd.f32 %v517, %v518
    %v521 = vsel %vm187, %v516, 0
    %523 = vmatpush.msra.mxu0 0.0
    %524 = vmatpush.msra.mxu0 0.0
    %525 = vmatpush.msra.mxu0 0.0
    %526 = vmatpush.msra.mxu0 0.0
    %527 = vmatpush.msra.mxu0 0.0
    %528 = vmatpush.msra.mxu0 0.0
    %529 = vmatpush.msra.mxu0 0.0
    %530 = vmatpush.msra.mxu0 0.0
    %531 = vmatpush.msra.mxu0 0.0
    %532 = vmatpush.msra.mxu0 0.0
    %533 = vmatpush.msra.mxu0 0.0
    %534 = vmatpush.msra.mxu0 0.0
    %535 = vmatpush.msra.mxu0 0.0
    %536 = vmatpush.msra.mxu0 0.0
    %v537 = vand.u32 %v156, 4294901760
    %538 = vmatpush.msra.mxu0 %v537
    %v539 = vand.u32 %v155, 4294901760
    %540 = vmatpush.msra.mxu0 %v539
    %v541 = vand.u32 %v521, 4294901760
    %v542 = vsub.f32 %v521, %v541
    %v543 = vand.u32 %v542, 4294901760
    %v544 = vsub.f32 %v542, %v543
    %v545 = vand.u32 %v544, 4294901760
    %546 = vmatmul.f32.gmra.mxu0 %v545
    %v547 = vpop.f32.mrf.mxu0
    %v548 = vadd.f32 0.0, %v547
    %549 = vdwg.mxu0
    %550 = vmatpush.msra.mxu0 0.0
    %551 = vmatpush.msra.mxu0 0.0
    %552 = vmatpush.msra.mxu0 0.0
    %553 = vmatpush.msra.mxu0 0.0
    %554 = vmatpush.msra.mxu0 0.0
    %555 = vmatpush.msra.mxu0 0.0
    %556 = vmatpush.msra.mxu0 0.0
    %557 = vmatpush.msra.mxu0 0.0
    %558 = vmatpush.msra.mxu0 0.0
    %559 = vmatpush.msra.mxu0 0.0
    %560 = vmatpush.msra.mxu0 0.0
    %561 = vmatpush.msra.mxu0 0.0
    %562 = vmatpush.msra.mxu0 0.0
    %563 = vmatpush.msra.mxu0 0.0
    %v564 = vand.u32 %v156, 4294901760
    %v565 = vsub.f32 %v156, %v564
    %v566 = vand.u32 %v565, 4294901760
    %v567 = vsub.f32 %v565, %v566
    %v568 = vand.u32 %v567, 4294901760
    %569 = vmatpush.msra.mxu0 %v568
    %v570 = vand.u32 %v155, 4294901760
    %v571 = vsub.f32 %v155, %v570
    %v572 = vand.u32 %v571, 4294901760
    %v573 = vsub.f32 %v571, %v572
    %v574 = vand.u32 %v573, 4294901760
    %575 = vmatpush.msra.mxu0 %v574
    %v576 = vand.u32 %v521, 4294901760
    %577 = vmatmul.f32.gmra.mxu0 %v576
    %v578 = vpop.f32.mrf.mxu0
    %v579 = vadd.f32 %v548, %v578
    %580 = vdwg.mxu0
    %581 = vmatpush.msra.mxu0 0.0
    %582 = vmatpush.msra.mxu0 0.0
    %583 = vmatpush.msra.mxu0 0.0
    %584 = vmatpush.msra.mxu0 0.0
    %585 = vmatpush.msra.mxu0 0.0
    %586 = vmatpush.msra.mxu0 0.0
    %587 = vmatpush.msra.mxu0 0.0
    %588 = vmatpush.msra.mxu0 0.0
    %589 = vmatpush.msra.mxu0 0.0
    %590 = vmatpush.msra.mxu0 0.0
    %591 = vmatpush.msra.mxu0 0.0
    %592 = vmatpush.msra.mxu0 0.0
    %593 = vmatpush.msra.mxu0 0.0
    %594 = vmatpush.msra.mxu0 0.0
    %v595 = vand.u32 %v156, 4294901760
    %v596 = vsub.f32 %v156, %v595
    %597 = vmatpush.msra.mxu0 %v596
    %v598 = vand.u32 %v155, 4294901760
    %v599 = vsub.f32 %v155, %v598
    %600 = vmatpush.msra.mxu0 %v599
    %v601 = vand.u32 %v521, 4294901760
    %v602 = vsub.f32 %v521, %v601
    %603 = vmatmul.f32.gmra.mxu0 %v602
    %v604 = vpop.f32.mrf.mxu0
    %v605 = vadd.f32 %v579, %v604
    %606 = vdwg.mxu0
    %607 = vmatpush.msra.mxu0 0.0
    %608 = vmatpush.msra.mxu0 0.0
    %609 = vmatpush.msra.mxu0 0.0
    %610 = vmatpush.msra.mxu0 0.0
    %611 = vmatpush.msra.mxu0 0.0
    %612 = vmatpush.msra.mxu0 0.0
    %613 = vmatpush.msra.mxu0 0.0
    %614 = vmatpush.msra.mxu0 0.0
    %615 = vmatpush.msra.mxu0 0.0
    %616 = vmatpush.msra.mxu0 0.0
    %617 = vmatpush.msra.mxu0 0.0
    %618 = vmatpush.msra.mxu0 0.0
    %619 = vmatpush.msra.mxu0 0.0
    %620 = vmatpush.msra.mxu0 0.0
    %v621 = vand.u32 %v156, 4294901760
    %622 = vmatpush.msra.mxu0 %v621
    %v623 = vand.u32 %v155, 4294901760
    %624 = vmatpush.msra.mxu0 %v623
    %v625 = vand.u32 %v521, 4294901760
    %v626 = vsub.f32 %v521, %v625
    %v627 = vand.u32 %v626, 4294901760
    %628 = vmatmul.f32.gmra.mxu0 %v627
    %v629 = vpop.f32.mrf.mxu0
    %v630 = vadd.f32 %v605, %v629
    %631 = vdwg.mxu0
    %632 = vmatpush.msra.mxu0 0.0
    %633 = vmatpush.msra.mxu0 0.0
    %634 = vmatpush.msra.mxu0 0.0
    %635 = vmatpush.msra.mxu0 0.0
    %636 = vmatpush.msra.mxu0 0.0
    %637 = vmatpush.msra.mxu0 0.0
    %638 = vmatpush.msra.mxu0 0.0
    %639 = vmatpush.msra.mxu0 0.0
    %640 = vmatpush.msra.mxu0 0.0
    %641 = vmatpush.msra.mxu0 0.0
    %642 = vmatpush.msra.mxu0 0.0
    %643 = vmatpush.msra.mxu0 0.0
    %644 = vmatpush.msra.mxu0 0.0
    %645 = vmatpush.msra.mxu0 0.0
    %v646 = vand.u32 %v156, 4294901760
    %v647 = vsub.f32 %v156, %v646
    %v648 = vand.u32 %v647, 4294901760
    %649 = vmatpush.msra.mxu0 %v648
    %v650 = vand.u32 %v155, 4294901760
    %v651 = vsub.f32 %v155, %v650
    %v652 = vand.u32 %v651, 4294901760
    %653 = vmatpush.msra.mxu0 %v652
    %v654 = vand.u32 %v521, 4294901760
    %655 = vmatmul.f32.gmra.mxu0 %v654
    %v656 = vpop.f32.mrf.mxu0
    %v657 = vadd.f32 %v630, %v656
    %658 = vdwg.mxu0
    %659 = vmatpush.msra.mxu0 0.0
    %660 = vmatpush.msra.mxu0 0.0
    %661 = vmatpush.msra.mxu0 0.0
    %662 = vmatpush.msra.mxu0 0.0
    %663 = vmatpush.msra.mxu0 0.0
    %664 = vmatpush.msra.mxu0 0.0
    %665 = vmatpush.msra.mxu0 0.0
    %666 = vmatpush.msra.mxu0 0.0
    %667 = vmatpush.msra.mxu0 0.0
    %668 = vmatpush.msra.mxu0 0.0
    %669 = vmatpush.msra.mxu0 0.0
    %670 = vmatpush.msra.mxu0 0.0
    %671 = vmatpush.msra.mxu0 0.0
    %672 = vmatpush.msra.mxu0 0.0
    %v673 = vand.u32 %v156, 4294901760
    %674 = vmatpush.msra.mxu0 %v673
    %v675 = vand.u32 %v155, 4294901760
    %676 = vmatpush.msra.mxu0 %v675
    %v677 = vand.u32 %v521, 4294901760
    %678 = vmatmul.f32.gmra.mxu0 %v677
    %v679 = vpop.f32.mrf.mxu0
    %v680 = vadd.f32 %v657, %v679
    %681 = vdwg.mxu0
    %v683 = vsel %vm187, %v519, 0
    %685 = vmatpush.msra.mxu0 0.0
    %686 = vmatpush.msra.mxu0 0.0
    %687 = vmatpush.msra.mxu0 0.0
    %688 = vmatpush.msra.mxu0 0.0
    %689 = vmatpush.msra.mxu0 0.0
    %690 = vmatpush.msra.mxu0 0.0
    %691 = vmatpush.msra.mxu0 0.0
    %692 = vmatpush.msra.mxu0 0.0
    %693 = vmatpush.msra.mxu0 0.0
    %694 = vmatpush.msra.mxu0 0.0
    %695 = vmatpush.msra.mxu0 0.0
    %696 = vmatpush.msra.mxu0 0.0
    %697 = vmatpush.msra.mxu0 0.0
    %698 = vmatpush.msra.mxu0 0.0
    %v699 = vand.u32 %v156, 4294901760
    %700 = vmatpush.msra.mxu0 %v699
    %v701 = vand.u32 %v155, 4294901760
    %702 = vmatpush.msra.mxu0 %v701
    %v703 = vand.u32 %v683, 4294901760
    %v704 = vsub.f32 %v683, %v703
    %v705 = vand.u32 %v704, 4294901760
    %v706 = vsub.f32 %v704, %v705
    %v707 = vand.u32 %v706, 4294901760
    %708 = vmatmul.f32.gmra.mxu0 %v707
    %v709 = vpop.f32.mrf.mxu0
    %v710 = vadd.f32 0.0, %v709
    %711 = vdwg.mxu0
    %712 = vmatpush.msra.mxu0 0.0
    %713 = vmatpush.msra.mxu0 0.0
    %714 = vmatpush.msra.mxu0 0.0
    %715 = vmatpush.msra.mxu0 0.0
    %716 = vmatpush.msra.mxu0 0.0
    %717 = vmatpush.msra.mxu0 0.0
    %718 = vmatpush.msra.mxu0 0.0
    %719 = vmatpush.msra.mxu0 0.0
    %720 = vmatpush.msra.mxu0 0.0
    %721 = vmatpush.msra.mxu0 0.0
    %722 = vmatpush.msra.mxu0 0.0
    %723 = vmatpush.msra.mxu0 0.0
    %724 = vmatpush.msra.mxu0 0.0
    %725 = vmatpush.msra.mxu0 0.0
    %v726 = vand.u32 %v156, 4294901760
    %v727 = vsub.f32 %v156, %v726
    %v728 = vand.u32 %v727, 4294901760
    %v729 = vsub.f32 %v727, %v728
    %v730 = vand.u32 %v729, 4294901760
    %731 = vmatpush.msra.mxu0 %v730
    %v732 = vand.u32 %v155, 4294901760
    %v733 = vsub.f32 %v155, %v732
    %v734 = vand.u32 %v733, 4294901760
    %v735 = vsub.f32 %v733, %v734
    %v736 = vand.u32 %v735, 4294901760
    %737 = vmatpush.msra.mxu0 %v736
    %v738 = vand.u32 %v683, 4294901760
    %739 = vmatmul.f32.gmra.mxu0 %v738
    %v740 = vpop.f32.mrf.mxu0
    %v741 = vadd.f32 %v710, %v740
    %742 = vdwg.mxu0
    %743 = vmatpush.msra.mxu0 0.0
    %744 = vmatpush.msra.mxu0 0.0
    %745 = vmatpush.msra.mxu0 0.0
    %746 = vmatpush.msra.mxu0 0.0
    %747 = vmatpush.msra.mxu0 0.0
    %748 = vmatpush.msra.mxu0 0.0
    %749 = vmatpush.msra.mxu0 0.0
    %750 = vmatpush.msra.mxu0 0.0
    %751 = vmatpush.msra.mxu0 0.0
    %752 = vmatpush.msra.mxu0 0.0
    %753 = vmatpush.msra.mxu0 0.0
    %754 = vmatpush.msra.mxu0 0.0
    %755 = vmatpush.msra.mxu0 0.0
    %756 = vmatpush.msra.mxu0 0.0
    %v757 = vand.u32 %v156, 4294901760
    %v758 = vsub.f32 %v156, %v757
    %759 = vmatpush.msra.mxu0 %v758
    %v760 = vand.u32 %v155, 4294901760
    %v761 = vsub.f32 %v155, %v760
    %762 = vmatpush.msra.mxu0 %v761
    %v763 = vand.u32 %v683, 4294901760
    %v764 = vsub.f32 %v683, %v763
    %765 = vmatmul.f32.gmra.mxu0 %v764
    %v766 = vpop.f32.mrf.mxu0
    %v767 = vadd.f32 %v741, %v766
    %768 = vdwg.mxu0
    %769 = vmatpush.msra.mxu0 0.0
    %770 = vmatpush.msra.mxu0 0.0
    %771 = vmatpush.msra.mxu0 0.0
    %772 = vmatpush.msra.mxu0 0.0
    %773 = vmatpush.msra.mxu0 0.0
    %774 = vmatpush.msra.mxu0 0.0
    %775 = vmatpush.msra.mxu0 0.0
    %776 = vmatpush.msra.mxu0 0.0
    %777 = vmatpush.msra.mxu0 0.0
    %778 = vmatpush.msra.mxu0 0.0
    %779 = vmatpush.msra.mxu0 0.0
    %780 = vmatpush.msra.mxu0 0.0
    %781 = vmatpush.msra.mxu0 0.0
    %782 = vmatpush.msra.mxu0 0.0
    %v783 = vand.u32 %v156, 4294901760
    %784 = vmatpush.msra.mxu0 %v783
    %v785 = vand.u32 %v155, 4294901760
    %786 = vmatpush.msra.mxu0 %v785
    %v787 = vand.u32 %v683, 4294901760
    %v788 = vsub.f32 %v683, %v787
    %v789 = vand.u32 %v788, 4294901760
    %790 = vmatmul.f32.gmra.mxu0 %v789
    %v791 = vpop.f32.mrf.mxu0
    %v792 = vadd.f32 %v767, %v791
    %793 = vdwg.mxu0
    %794 = vmatpush.msra.mxu0 0.0
    %795 = vmatpush.msra.mxu0 0.0
    %796 = vmatpush.msra.mxu0 0.0
    %797 = vmatpush.msra.mxu0 0.0
    %798 = vmatpush.msra.mxu0 0.0
    %799 = vmatpush.msra.mxu0 0.0
    %800 = vmatpush.msra.mxu0 0.0
    %801 = vmatpush.msra.mxu0 0.0
    %802 = vmatpush.msra.mxu0 0.0
    %803 = vmatpush.msra.mxu0 0.0
    %804 = vmatpush.msra.mxu0 0.0
    %805 = vmatpush.msra.mxu0 0.0
    %806 = vmatpush.msra.mxu0 0.0
    %807 = vmatpush.msra.mxu0 0.0
    %v808 = vand.u32 %v156, 4294901760
    %v809 = vsub.f32 %v156, %v808
    %v810 = vand.u32 %v809, 4294901760
    %811 = vmatpush.msra.mxu0 %v810
    %v812 = vand.u32 %v155, 4294901760
    %v813 = vsub.f32 %v155, %v812
    %v814 = vand.u32 %v813, 4294901760
    %815 = vmatpush.msra.mxu0 %v814
    %v816 = vand.u32 %v683, 4294901760
    %817 = vmatmul.f32.gmra.mxu0 %v816
    %v818 = vpop.f32.mrf.mxu0
    %v819 = vadd.f32 %v792, %v818
    %820 = vdwg.mxu0
    %821 = vmatpush.msra.mxu0 0.0
    %822 = vmatpush.msra.mxu0 0.0
    %823 = vmatpush.msra.mxu0 0.0
    %824 = vmatpush.msra.mxu0 0.0
    %825 = vmatpush.msra.mxu0 0.0
    %826 = vmatpush.msra.mxu0 0.0
    %827 = vmatpush.msra.mxu0 0.0
    %828 = vmatpush.msra.mxu0 0.0
    %829 = vmatpush.msra.mxu0 0.0
    %830 = vmatpush.msra.mxu0 0.0
    %831 = vmatpush.msra.mxu0 0.0
    %832 = vmatpush.msra.mxu0 0.0
    %833 = vmatpush.msra.mxu0 0.0
    %834 = vmatpush.msra.mxu0 0.0
    %v835 = vand.u32 %v156, 4294901760
    %836 = vmatpush.msra.mxu0 %v835
    %v837 = vand.u32 %v155, 4294901760
    %838 = vmatpush.msra.mxu0 %v837
    %v839 = vand.u32 %v683, 4294901760
    %840 = vmatmul.f32.gmra.mxu0 %v839
    %v841 = vpop.f32.mrf.mxu0
    %v842 = vadd.f32 %v819, %v841
    %843 = vdwg.mxu0
    %v844 = vld [vmem:[#allocation5 + $0x2] sm:$0x1]
    %v845 = vld [vmem:[#allocation5 + $0x7] sm:$0x1]
    %v846 = vmul.f32 %v680, %v844
    %v847 = vmul.f32 %v842, %v845
    %v848 = vsub.f32 %v846, %v847
    %v849 = vmul.f32 %v680, %v845
    %v850 = vmul.f32 %v842, %v844
    %v851 = vadd.f32 %v849, %v850
    %v853 = vsel %vm187, %v848, 0
    %855 = vmatpush.msra.mxu0 0.0
    %856 = vmatpush.msra.mxu0 0.0
    %857 = vmatpush.msra.mxu0 0.0
    %858 = vmatpush.msra.mxu0 0.0
    %859 = vmatpush.msra.mxu0 0.0
    %860 = vmatpush.msra.mxu0 0.0
    %861 = vmatpush.msra.mxu0 0.0
    %862 = vmatpush.msra.mxu0 0.0
    %863 = vmatpush.msra.mxu0 0.0
    %864 = vmatpush.msra.mxu0 0.0
    %865 = vmatpush.msra.mxu0 0.0
    %866 = vmatpush.msra.mxu0 0.0
    %867 = vmatpush.msra.mxu0 0.0
    %868 = vmatpush.msra.mxu0 0.0
    %v869 = vand.u32 %v156, 4294901760
    %870 = vmatpush.msra.mxu0 %v869
    %v871 = vand.u32 %v155, 4294901760
    %872 = vmatpush.msra.mxu0 %v871
    %v873 = vand.u32 %v853, 4294901760
    %v874 = vsub.f32 %v853, %v873
    %v875 = vand.u32 %v874, 4294901760
    %v876 = vsub.f32 %v874, %v875
    %v877 = vand.u32 %v876, 4294901760
    %878 = vmatmul.f32.gmra.mxu0 %v877
    %v879 = vpop.f32.mrf.mxu0
    %v880 = vadd.f32 0.0, %v879
    %881 = vdwg.mxu0
    %882 = vmatpush.msra.mxu0 0.0
    %883 = vmatpush.msra.mxu0 0.0
    %884 = vmatpush.msra.mxu0 0.0
    %885 = vmatpush.msra.mxu0 0.0
    %886 = vmatpush.msra.mxu0 0.0
    %887 = vmatpush.msra.mxu0 0.0
    %888 = vmatpush.msra.mxu0 0.0
    %889 = vmatpush.msra.mxu0 0.0
    %890 = vmatpush.msra.mxu0 0.0
    %891 = vmatpush.msra.mxu0 0.0
    %892 = vmatpush.msra.mxu0 0.0
    %893 = vmatpush.msra.mxu0 0.0
    %894 = vmatpush.msra.mxu0 0.0
    %895 = vmatpush.msra.mxu0 0.0
    %v896 = vand.u32 %v156, 4294901760
    %v897 = vsub.f32 %v156, %v896
    %v898 = vand.u32 %v897, 4294901760
    %v899 = vsub.f32 %v897, %v898
    %v900 = vand.u32 %v899, 4294901760
    %901 = vmatpush.msra.mxu0 %v900
    %v902 = vand.u32 %v155, 4294901760
    %v903 = vsub.f32 %v155, %v902
    %v904 = vand.u32 %v903, 4294901760
    %v905 = vsub.f32 %v903, %v904
    %v906 = vand.u32 %v905, 4294901760
    %907 = vmatpush.msra.mxu0 %v906
    %v908 = vand.u32 %v853, 4294901760
    %909 = vmatmul.f32.gmra.mxu0 %v908
    %v910 = vpop.f32.mrf.mxu0
    %v911 = vadd.f32 %v880, %v910
    %912 = vdwg.mxu0
    %913 = vmatpush.msra.mxu0 0.0
    %914 = vmatpush.msra.mxu0 0.0
    %915 = vmatpush.msra.mxu0 0.0
    %916 = vmatpush.msra.mxu0 0.0
    %917 = vmatpush.msra.mxu0 0.0
    %918 = vmatpush.msra.mxu0 0.0
    %919 = vmatpush.msra.mxu0 0.0
    %920 = vmatpush.msra.mxu0 0.0
    %921 = vmatpush.msra.mxu0 0.0
    %922 = vmatpush.msra.mxu0 0.0
    %923 = vmatpush.msra.mxu0 0.0
    %924 = vmatpush.msra.mxu0 0.0
    %925 = vmatpush.msra.mxu0 0.0
    %926 = vmatpush.msra.mxu0 0.0
    %v927 = vand.u32 %v156, 4294901760
    %v928 = vsub.f32 %v156, %v927
    %929 = vmatpush.msra.mxu0 %v928
    %v930 = vand.u32 %v155, 4294901760
    %v931 = vsub.f32 %v155, %v930
    %932 = vmatpush.msra.mxu0 %v931
    %v933 = vand.u32 %v853, 4294901760
    %v934 = vsub.f32 %v853, %v933
    %935 = vmatmul.f32.gmra.mxu0 %v934
    %v936 = vpop.f32.mrf.mxu0
    %v937 = vadd.f32 %v911, %v936
    %938 = vdwg.mxu0
    %939 = vmatpush.msra.mxu0 0.0
    %940 = vmatpush.msra.mxu0 0.0
    %941 = vmatpush.msra.mxu0 0.0
    %942 = vmatpush.msra.mxu0 0.0
    %943 = vmatpush.msra.mxu0 0.0
    %944 = vmatpush.msra.mxu0 0.0
    %945 = vmatpush.msra.mxu0 0.0
    %946 = vmatpush.msra.mxu0 0.0
    %947 = vmatpush.msra.mxu0 0.0
    %948 = vmatpush.msra.mxu0 0.0
    %949 = vmatpush.msra.mxu0 0.0
    %950 = vmatpush.msra.mxu0 0.0
    %951 = vmatpush.msra.mxu0 0.0
    %952 = vmatpush.msra.mxu0 0.0
    %v953 = vand.u32 %v156, 4294901760
    %954 = vmatpush.msra.mxu0 %v953
    %v955 = vand.u32 %v155, 4294901760
    %956 = vmatpush.msra.mxu0 %v955
    %v957 = vand.u32 %v853, 4294901760
    %v958 = vsub.f32 %v853, %v957
    %v959 = vand.u32 %v958, 4294901760
    %960 = vmatmul.f32.gmra.mxu0 %v959
    %v961 = vpop.f32.mrf.mxu0
    %v962 = vadd.f32 %v937, %v961
    %963 = vdwg.mxu0
    %964 = vmatpush.msra.mxu0 0.0
    %965 = vmatpush.msra.mxu0 0.0
    %966 = vmatpush.msra.mxu0 0.0
    %967 = vmatpush.msra.mxu0 0.0
    %968 = vmatpush.msra.mxu0 0.0
    %969 = vmatpush.msra.mxu0 0.0
    %970 = vmatpush.msra.mxu0 0.0
    %971 = vmatpush.msra.mxu0 0.0
    %972 = vmatpush.msra.mxu0 0.0
    %973 = vmatpush.msra.mxu0 0.0
    %974 = vmatpush.msra.mxu0 0.0
    %975 = vmatpush.msra.mxu0 0.0
    %976 = vmatpush.msra.mxu0 0.0
    %977 = vmatpush.msra.mxu0 0.0
    %v978 = vand.u32 %v156, 4294901760
    %v979 = vsub.f32 %v156, %v978
    %v980 = vand.u32 %v979, 4294901760
    %981 = vmatpush.msra.mxu0 %v980
    %v982 = vand.u32 %v155, 4294901760
    %v983 = vsub.f32 %v155, %v982
    %v984 = vand.u32 %v983, 4294901760
    %985 = vmatpush.msra.mxu0 %v984
    %v986 = vand.u32 %v853, 4294901760
    %987 = vmatmul.f32.gmra.mxu0 %v986
    %v988 = vpop.f32.mrf.mxu0
    %v989 = vadd.f32 %v962, %v988
    %990 = vdwg.mxu0
    %991 = vmatpush.msra.mxu0 0.0
    %992 = vmatpush.msra.mxu0 0.0
    %993 = vmatpush.msra.mxu0 0.0
    %994 = vmatpush.msra.mxu0 0.0
    %995 = vmatpush.msra.mxu0 0.0
    %996 = vmatpush.msra.mxu0 0.0
    %997 = vmatpush.msra.mxu0 0.0
    %998 = vmatpush.msra.mxu0 0.0
    %999 = vmatpush.msra.mxu0 0.0
    %1000 = vmatpush.msra.mxu0 0.0
    %1001 = vmatpush.msra.mxu0 0.0
    %1002 = vmatpush.msra.mxu0 0.0
    %1003 = vmatpush.msra.mxu0 0.0
    %1004 = vmatpush.msra.mxu0 0.0
    %v1005 = vand.u32 %v156, 4294901760
    %1006 = vmatpush.msra.mxu0 %v1005
    %v1007 = vand.u32 %v155, 4294901760
    %1008 = vmatpush.msra.mxu0 %v1007
    %v1009 = vand.u32 %v853, 4294901760
    %1010 = vmatmul.f32.gmra.mxu0 %v1009
    %v1011 = vpop.f32.mrf.mxu0
    %v1012 = vadd.f32 %v989, %v1011
    %1013 = vdwg.mxu0
    %v1015 = vsel %vm187, %v851, 0
    %1017 = vmatpush.msra.mxu0 0.0
    %1018 = vmatpush.msra.mxu0 0.0
    %1019 = vmatpush.msra.mxu0 0.0
    %1020 = vmatpush.msra.mxu0 0.0
    %1021 = vmatpush.msra.mxu0 0.0
    %1022 = vmatpush.msra.mxu0 0.0
    %1023 = vmatpush.msra.mxu0 0.0
    %1024 = vmatpush.msra.mxu0 0.0
    %1025 = vmatpush.msra.mxu0 0.0
    %1026 = vmatpush.msra.mxu0 0.0
    %1027 = vmatpush.msra.mxu0 0.0
    %1028 = vmatpush.msra.mxu0 0.0
    %1029 = vmatpush.msra.mxu0 0.0
    %1030 = vmatpush.msra.mxu0 0.0
    %v1031 = vand.u32 %v156, 4294901760
    %1032 = vmatpush.msra.mxu0 %v1031
    %v1033 = vand.u32 %v155, 4294901760
    %1034 = vmatpush.msra.mxu0 %v1033
    %v1035 = vand.u32 %v1015, 4294901760
    %v1036 = vsub.f32 %v1015, %v1035
    %v1037 = vand.u32 %v1036, 4294901760
    %v1038 = vsub.f32 %v1036, %v1037
    %v1039 = vand.u32 %v1038, 4294901760
    %1040 = vmatmul.f32.gmra.mxu0 %v1039
    %v1041 = vpop.f32.mrf.mxu0
    %v1042 = vadd.f32 0.0, %v1041
    %1043 = vdwg.mxu0
    %1044 = vmatpush.msra.mxu0 0.0
    %1045 = vmatpush.msra.mxu0 0.0
    %1046 = vmatpush.msra.mxu0 0.0
    %1047 = vmatpush.msra.mxu0 0.0
    %1048 = vmatpush.msra.mxu0 0.0
    %1049 = vmatpush.msra.mxu0 0.0
    %1050 = vmatpush.msra.mxu0 0.0
    %1051 = vmatpush.msra.mxu0 0.0
    %1052 = vmatpush.msra.mxu0 0.0
    %1053 = vmatpush.msra.mxu0 0.0
    %1054 = vmatpush.msra.mxu0 0.0
    %1055 = vmatpush.msra.mxu0 0.0
    %1056 = vmatpush.msra.mxu0 0.0
    %1057 = vmatpush.msra.mxu0 0.0
    %v1058 = vand.u32 %v156, 4294901760
    %v1059 = vsub.f32 %v156, %v1058
    %v1060 = vand.u32 %v1059, 4294901760
    %v1061 = vsub.f32 %v1059, %v1060
    %v1062 = vand.u32 %v1061, 4294901760
    %1063 = vmatpush.msra.mxu0 %v1062
    %v1064 = vand.u32 %v155, 4294901760
    %v1065 = vsub.f32 %v155, %v1064
    %v1066 = vand.u32 %v1065, 4294901760
    %v1067 = vsub.f32 %v1065, %v1066
    %v1068 = vand.u32 %v1067, 4294901760
    %1069 = vmatpush.msra.mxu0 %v1068
    %v1070 = vand.u32 %v1015, 4294901760
    %1071 = vmatmul.f32.gmra.mxu0 %v1070
    %v1072 = vpop.f32.mrf.mxu0
    %v1073 = vadd.f32 %v1042, %v1072
    %1074 = vdwg.mxu0
    %1075 = vmatpush.msra.mxu0 0.0
    %1076 = vmatpush.msra.mxu0 0.0
    %1077 = vmatpush.msra.mxu0 0.0
    %1078 = vmatpush.msra.mxu0 0.0
    %1079 = vmatpush.msra.mxu0 0.0
    %1080 = vmatpush.msra.mxu0 0.0
    %1081 = vmatpush.msra.mxu0 0.0
    %1082 = vmatpush.msra.mxu0 0.0
    %1083 = vmatpush.msra.mxu0 0.0
    %1084 = vmatpush.msra.mxu0 0.0
    %1085 = vmatpush.msra.mxu0 0.0
    %1086 = vmatpush.msra.mxu0 0.0
    %1087 = vmatpush.msra.mxu0 0.0
    %1088 = vmatpush.msra.mxu0 0.0
    %v1089 = vand.u32 %v156, 4294901760
    %v1090 = vsub.f32 %v156, %v1089
    %1091 = vmatpush.msra.mxu0 %v1090
    %v1092 = vand.u32 %v155, 4294901760
    %v1093 = vsub.f32 %v155, %v1092
    %1094 = vmatpush.msra.mxu0 %v1093
    %v1095 = vand.u32 %v1015, 4294901760
    %v1096 = vsub.f32 %v1015, %v1095
    %1097 = vmatmul.f32.gmra.mxu0 %v1096
    %v1098 = vpop.f32.mrf.mxu0
    %v1099 = vadd.f32 %v1073, %v1098
    %1100 = vdwg.mxu0
    %1101 = vmatpush.msra.mxu0 0.0
    %1102 = vmatpush.msra.mxu0 0.0
    %1103 = vmatpush.msra.mxu0 0.0
    %1104 = vmatpush.msra.mxu0 0.0
    %1105 = vmatpush.msra.mxu0 0.0
    %1106 = vmatpush.msra.mxu0 0.0
    %1107 = vmatpush.msra.mxu0 0.0
    %1108 = vmatpush.msra.mxu0 0.0
    %1109 = vmatpush.msra.mxu0 0.0
    %1110 = vmatpush.msra.mxu0 0.0
    %1111 = vmatpush.msra.mxu0 0.0
    %1112 = vmatpush.msra.mxu0 0.0
    %1113 = vmatpush.msra.mxu0 0.0
    %1114 = vmatpush.msra.mxu0 0.0
    %v1115 = vand.u32 %v156, 4294901760
    %1116 = vmatpush.msra.mxu0 %v1115
    %v1117 = vand.u32 %v155, 4294901760
    %1118 = vmatpush.msra.mxu0 %v1117
    %v1119 = vand.u32 %v1015, 4294901760
    %v1120 = vsub.f32 %v1015, %v1119
    %v1121 = vand.u32 %v1120, 4294901760
    %1122 = vmatmul.f32.gmra.mxu0 %v1121
    %v1123 = vpop.f32.mrf.mxu0
    %v1124 = vadd.f32 %v1099, %v1123
    %1125 = vdwg.mxu0
    %1126 = vmatpush.msra.mxu0 0.0
    %1127 = vmatpush.msra.mxu0 0.0
    %1128 = vmatpush.msra.mxu0 0.0
    %1129 = vmatpush.msra.mxu0 0.0
    %1130 = vmatpush.msra.mxu0 0.0
    %1131 = vmatpush.msra.mxu0 0.0
    %1132 = vmatpush.msra.mxu0 0.0
    %1133 = vmatpush.msra.mxu0 0.0
    %1134 = vmatpush.msra.mxu0 0.0
    %1135 = vmatpush.msra.mxu0 0.0
    %1136 = vmatpush.msra.mxu0 0.0
    %1137 = vmatpush.msra.mxu0 0.0
    %1138 = vmatpush.msra.mxu0 0.0
    %1139 = vmatpush.msra.mxu0 0.0
    %v1140 = vand.u32 %v156, 4294901760
    %v1141 = vsub.f32 %v156, %v1140
    %v1142 = vand.u32 %v1141, 4294901760
    %1143 = vmatpush.msra.mxu0 %v1142
    %v1144 = vand.u32 %v155, 4294901760
    %v1145 = vsub.f32 %v155, %v1144
    %v1146 = vand.u32 %v1145, 4294901760
    %1147 = vmatpush.msra.mxu0 %v1146
    %v1148 = vand.u32 %v1015, 4294901760
    %1149 = vmatmul.f32.gmra.mxu0 %v1148
    %v1150 = vpop.f32.mrf.mxu0
    %v1151 = vadd.f32 %v1124, %v1150
    %1152 = vdwg.mxu0
    %1153 = vmatpush.msra.mxu0 0.0
    %1154 = vmatpush.msra.mxu0 0.0
    %1155 = vmatpush.msra.mxu0 0.0
    %1156 = vmatpush.msra.mxu0 0.0
    %1157 = vmatpush.msra.mxu0 0.0
    %1158 = vmatpush.msra.mxu0 0.0
    %1159 = vmatpush.msra.mxu0 0.0
    %1160 = vmatpush.msra.mxu0 0.0
    %1161 = vmatpush.msra.mxu0 0.0
    %1162 = vmatpush.msra.mxu0 0.0
    %1163 = vmatpush.msra.mxu0 0.0
    %1164 = vmatpush.msra.mxu0 0.0
    %1165 = vmatpush.msra.mxu0 0.0
    %1166 = vmatpush.msra.mxu0 0.0
    %v1167 = vand.u32 %v156, 4294901760
    %1168 = vmatpush.msra.mxu0 %v1167
    %v1169 = vand.u32 %v155, 4294901760
    %1170 = vmatpush.msra.mxu0 %v1169
    %v1171 = vand.u32 %v1015, 4294901760
    %1172 = vmatmul.f32.gmra.mxu0 %v1171
    %v1173 = vpop.f32.mrf.mxu0
    %v1174 = vadd.f32 %v1151, %v1173
    %1175 = vdwg.mxu0
    %v1176 = vld [vmem:[#allocation5 + $0x3] sm:$0x1]
    %v1177 = vld [vmem:[#allocation5 + $0x8] sm:$0x1]
    %v1178 = vmul.f32 %v1012, %v1176
    %v1179 = vmul.f32 %v1174, %v1177
    %v1180 = vsub.f32 %v1178, %v1179
    %v1181 = vmul.f32 %v1012, %v1177
    %v1182 = vmul.f32 %v1174, %v1176
    %v1183 = vadd.f32 %v1181, %v1182
    %v1185 = vsel %vm187, %v1180, 0
    %1187 = vmatpush.msra.mxu0 0.0
    %1188 = vmatpush.msra.mxu0 0.0
    %1189 = vmatpush.msra.mxu0 0.0
    %1190 = vmatpush.msra.mxu0 0.0
    %1191 = vmatpush.msra.mxu0 0.0
    %1192 = vmatpush.msra.mxu0 0.0
    %1193 = vmatpush.msra.mxu0 0.0
    %1194 = vmatpush.msra.mxu0 0.0
    %1195 = vmatpush.msra.mxu0 0.0
    %1196 = vmatpush.msra.mxu0 0.0
    %1197 = vmatpush.msra.mxu0 0.0
    %1198 = vmatpush.msra.mxu0 0.0
    %1199 = vmatpush.msra.mxu0 0.0
    %1200 = vmatpush.msra.mxu0 0.0
    %v1201 = vand.u32 %v156, 4294901760
    %1202 = vmatpush.msra.mxu0 %v1201
    %v1203 = vand.u32 %v155, 4294901760
    %1204 = vmatpush.msra.mxu0 %v1203
    %v1205 = vand.u32 %v1185, 4294901760
    %v1206 = vsub.f32 %v1185, %v1205
    %v1207 = vand.u32 %v1206, 4294901760
    %v1208 = vsub.f32 %v1206, %v1207
    %v1209 = vand.u32 %v1208, 4294901760
    %1210 = vmatmul.f32.gmra.mxu0 %v1209
    %v1211 = vpop.f32.mrf.mxu0
    %v1212 = vadd.f32 0.0, %v1211
    %1213 = vdwg.mxu0
    %1214 = vmatpush.msra.mxu0 0.0
    %1215 = vmatpush.msra.mxu0 0.0
    %1216 = vmatpush.msra.mxu0 0.0
    %1217 = vmatpush.msra.mxu0 0.0
    %1218 = vmatpush.msra.mxu0 0.0
    %1219 = vmatpush.msra.mxu0 0.0
    %1220 = vmatpush.msra.mxu0 0.0
    %1221 = vmatpush.msra.mxu0 0.0
    %1222 = vmatpush.msra.mxu0 0.0
    %1223 = vmatpush.msra.mxu0 0.0
    %1224 = vmatpush.msra.mxu0 0.0
    %1225 = vmatpush.msra.mxu0 0.0
    %1226 = vmatpush.msra.mxu0 0.0
    %1227 = vmatpush.msra.mxu0 0.0
    %v1228 = vand.u32 %v156, 4294901760
    %v1229 = vsub.f32 %v156, %v1228
    %v1230 = vand.u32 %v1229, 4294901760
    %v1231 = vsub.f32 %v1229, %v1230
    %v1232 = vand.u32 %v1231, 4294901760
    %1233 = vmatpush.msra.mxu0 %v1232
    %v1234 = vand.u32 %v155, 4294901760
    %v1235 = vsub.f32 %v155, %v1234
    %v1236 = vand.u32 %v1235, 4294901760
    %v1237 = vsub.f32 %v1235, %v1236
    %v1238 = vand.u32 %v1237, 4294901760
    %1239 = vmatpush.msra.mxu0 %v1238
    %v1240 = vand.u32 %v1185, 4294901760
    %1241 = vmatmul.f32.gmra.mxu0 %v1240
    %v1242 = vpop.f32.mrf.mxu0
    %v1243 = vadd.f32 %v1212, %v1242
    %1244 = vdwg.mxu0
    %1245 = vmatpush.msra.mxu0 0.0
    %1246 = vmatpush.msra.mxu0 0.0
    %1247 = vmatpush.msra.mxu0 0.0
    %1248 = vmatpush.msra.mxu0 0.0
    %1249 = vmatpush.msra.mxu0 0.0
    %1250 = vmatpush.msra.mxu0 0.0
    %1251 = vmatpush.msra.mxu0 0.0
    %1252 = vmatpush.msra.mxu0 0.0
    %1253 = vmatpush.msra.mxu0 0.0
    %1254 = vmatpush.msra.mxu0 0.0
    %1255 = vmatpush.msra.mxu0 0.0
    %1256 = vmatpush.msra.mxu0 0.0
    %1257 = vmatpush.msra.mxu0 0.0
    %1258 = vmatpush.msra.mxu0 0.0
    %v1259 = vand.u32 %v156, 4294901760
    %v1260 = vsub.f32 %v156, %v1259
    %1261 = vmatpush.msra.mxu0 %v1260
    %v1262 = vand.u32 %v155, 4294901760
    %v1263 = vsub.f32 %v155, %v1262
    %1264 = vmatpush.msra.mxu0 %v1263
    %v1265 = vand.u32 %v1185, 4294901760
    %v1266 = vsub.f32 %v1185, %v1265
    %1267 = vmatmul.f32.gmra.mxu0 %v1266
    %v1268 = vpop.f32.mrf.mxu0
    %v1269 = vadd.f32 %v1243, %v1268
    %1270 = vdwg.mxu0
    %1271 = vmatpush.msra.mxu0 0.0
    %1272 = vmatpush.msra.mxu0 0.0
    %1273 = vmatpush.msra.mxu0 0.0
    %1274 = vmatpush.msra.mxu0 0.0
    %1275 = vmatpush.msra.mxu0 0.0
    %1276 = vmatpush.msra.mxu0 0.0
    %1277 = vmatpush.msra.mxu0 0.0
    %1278 = vmatpush.msra.mxu0 0.0
    %1279 = vmatpush.msra.mxu0 0.0
    %1280 = vmatpush.msra.mxu0 0.0
    %1281 = vmatpush.msra.mxu0 0.0
    %1282 = vmatpush.msra.mxu0 0.0
    %1283 = vmatpush.msra.mxu0 0.0
    %1284 = vmatpush.msra.mxu0 0.0
    %v1285 = vand.u32 %v156, 4294901760
    %1286 = vmatpush.msra.mxu0 %v1285
    %v1287 = vand.u32 %v155, 4294901760
    %1288 = vmatpush.msra.mxu0 %v1287
    %v1289 = vand.u32 %v1185, 4294901760
    %v1290 = vsub.f32 %v1185, %v1289
    %v1291 = vand.u32 %v1290, 4294901760
    %1292 = vmatmul.f32.gmra.mxu0 %v1291
    %v1293 = vpop.f32.mrf.mxu0
    %v1294 = vadd.f32 %v1269, %v1293
    %1295 = vdwg.mxu0
    %1296 = vmatpush.msra.mxu0 0.0
    %1297 = vmatpush.msra.mxu0 0.0
    %1298 = vmatpush.msra.mxu0 0.0
    %1299 = vmatpush.msra.mxu0 0.0
    %1300 = vmatpush.msra.mxu0 0.0
    %1301 = vmatpush.msra.mxu0 0.0
    %1302 = vmatpush.msra.mxu0 0.0
    %1303 = vmatpush.msra.mxu0 0.0
    %1304 = vmatpush.msra.mxu0 0.0
    %1305 = vmatpush.msra.mxu0 0.0
    %1306 = vmatpush.msra.mxu0 0.0
    %1307 = vmatpush.msra.mxu0 0.0
    %1308 = vmatpush.msra.mxu0 0.0
    %1309 = vmatpush.msra.mxu0 0.0
    %v1310 = vand.u32 %v156, 4294901760
    %v1311 = vsub.f32 %v156, %v1310
    %v1312 = vand.u32 %v1311, 4294901760
    %1313 = vmatpush.msra.mxu0 %v1312
    %v1314 = vand.u32 %v155, 4294901760
    %v1315 = vsub.f32 %v155, %v1314
    %v1316 = vand.u32 %v1315, 4294901760
    %1317 = vmatpush.msra.mxu0 %v1316
    %v1318 = vand.u32 %v1185, 4294901760
    %1319 = vmatmul.f32.gmra.mxu0 %v1318
    %v1320 = vpop.f32.mrf.mxu0
    %v1321 = vadd.f32 %v1294, %v1320
    %1322 = vdwg.mxu0
    %1323 = vmatpush.msra.mxu0 0.0
    %1324 = vmatpush.msra.mxu0 0.0
    %1325 = vmatpush.msra.mxu0 0.0
    %1326 = vmatpush.msra.mxu0 0.0
    %1327 = vmatpush.msra.mxu0 0.0
    %1328 = vmatpush.msra.mxu0 0.0
    %1329 = vmatpush.msra.mxu0 0.0
    %1330 = vmatpush.msra.mxu0 0.0
    %1331 = vmatpush.msra.mxu0 0.0
    %1332 = vmatpush.msra.mxu0 0.0
    %1333 = vmatpush.msra.mxu0 0.0
    %1334 = vmatpush.msra.mxu0 0.0
    %1335 = vmatpush.msra.mxu0 0.0
    %1336 = vmatpush.msra.mxu0 0.0
    %v1337 = vand.u32 %v156, 4294901760
    %1338 = vmatpush.msra.mxu0 %v1337
    %v1339 = vand.u32 %v155, 4294901760
    %1340 = vmatpush.msra.mxu0 %v1339
    %v1341 = vand.u32 %v1185, 4294901760
    %1342 = vmatmul.f32.gmra.mxu0 %v1341
    %v1343 = vpop.f32.mrf.mxu0
    %v1344 = vadd.f32 %v1321, %v1343
    %1345 = vdwg.mxu0
    %v1347 = vsel %vm187, %v1183, 0
    %1349 = vmatpush.msra.mxu0 0.0
    %1350 = vmatpush.msra.mxu0 0.0
    %1351 = vmatpush.msra.mxu0 0.0
    %1352 = vmatpush.msra.mxu0 0.0
    %1353 = vmatpush.msra.mxu0 0.0
    %1354 = vmatpush.msra.mxu0 0.0
    %1355 = vmatpush.msra.mxu0 0.0
    %1356 = vmatpush.msra.mxu0 0.0
    %1357 = vmatpush.msra.mxu0 0.0
    %1358 = vmatpush.msra.mxu0 0.0
    %1359 = vmatpush.msra.mxu0 0.0
    %1360 = vmatpush.msra.mxu0 0.0
    %1361 = vmatpush.msra.mxu0 0.0
    %1362 = vmatpush.msra.mxu0 0.0
    %v1363 = vand.u32 %v156, 4294901760
    %1364 = vmatpush.msra.mxu0 %v1363
    %v1365 = vand.u32 %v155, 4294901760
    %1366 = vmatpush.msra.mxu0 %v1365
    %v1367 = vand.u32 %v1347, 4294901760
    %v1368 = vsub.f32 %v1347, %v1367
    %v1369 = vand.u32 %v1368, 4294901760
    %v1370 = vsub.f32 %v1368, %v1369
    %v1371 = vand.u32 %v1370, 4294901760
    %1372 = vmatmul.f32.gmra.mxu0 %v1371
    %v1373 = vpop.f32.mrf.mxu0
    %v1374 = vadd.f32 0.0, %v1373
    %1375 = vdwg.mxu0
    %1376 = vmatpush.msra.mxu0 0.0
    %1377 = vmatpush.msra.mxu0 0.0
    %1378 = vmatpush.msra.mxu0 0.0
    %1379 = vmatpush.msra.mxu0 0.0
    %1380 = vmatpush.msra.mxu0 0.0
    %1381 = vmatpush.msra.mxu0 0.0
    %1382 = vmatpush.msra.mxu0 0.0
    %1383 = vmatpush.msra.mxu0 0.0
    %1384 = vmatpush.msra.mxu0 0.0
    %1385 = vmatpush.msra.mxu0 0.0
    %1386 = vmatpush.msra.mxu0 0.0
    %1387 = vmatpush.msra.mxu0 0.0
    %1388 = vmatpush.msra.mxu0 0.0
    %1389 = vmatpush.msra.mxu0 0.0
    %v1390 = vand.u32 %v156, 4294901760
    %v1391 = vsub.f32 %v156, %v1390
    %v1392 = vand.u32 %v1391, 4294901760
    %v1393 = vsub.f32 %v1391, %v1392
    %v1394 = vand.u32 %v1393, 4294901760
    %1395 = vmatpush.msra.mxu0 %v1394
    %v1396 = vand.u32 %v155, 4294901760
    %v1397 = vsub.f32 %v155, %v1396
    %v1398 = vand.u32 %v1397, 4294901760
    %v1399 = vsub.f32 %v1397, %v1398
    %v1400 = vand.u32 %v1399, 4294901760
    %1401 = vmatpush.msra.mxu0 %v1400
    %v1402 = vand.u32 %v1347, 4294901760
    %1403 = vmatmul.f32.gmra.mxu0 %v1402
    %v1404 = vpop.f32.mrf.mxu0
    %v1405 = vadd.f32 %v1374, %v1404
    %1406 = vdwg.mxu0
    %1407 = vmatpush.msra.mxu0 0.0
    %1408 = vmatpush.msra.mxu0 0.0
    %1409 = vmatpush.msra.mxu0 0.0
    %1410 = vmatpush.msra.mxu0 0.0
    %1411 = vmatpush.msra.mxu0 0.0
    %1412 = vmatpush.msra.mxu0 0.0
    %1413 = vmatpush.msra.mxu0 0.0
    %1414 = vmatpush.msra.mxu0 0.0
    %1415 = vmatpush.msra.mxu0 0.0
    %1416 = vmatpush.msra.mxu0 0.0
    %1417 = vmatpush.msra.mxu0 0.0
    %1418 = vmatpush.msra.mxu0 0.0
    %1419 = vmatpush.msra.mxu0 0.0
    %1420 = vmatpush.msra.mxu0 0.0
    %v1421 = vand.u32 %v156, 4294901760
    %v1422 = vsub.f32 %v156, %v1421
    %1423 = vmatpush.msra.mxu0 %v1422
    %v1424 = vand.u32 %v155, 4294901760
    %v1425 = vsub.f32 %v155, %v1424
    %1426 = vmatpush.msra.mxu0 %v1425
    %v1427 = vand.u32 %v1347, 4294901760
    %v1428 = vsub.f32 %v1347, %v1427
    %1429 = vmatmul.f32.gmra.mxu0 %v1428
    %v1430 = vpop.f32.mrf.mxu0
    %v1431 = vadd.f32 %v1405, %v1430
    %1432 = vdwg.mxu0
    %1433 = vmatpush.msra.mxu0 0.0
    %1434 = vmatpush.msra.mxu0 0.0
    %1435 = vmatpush.msra.mxu0 0.0
    %1436 = vmatpush.msra.mxu0 0.0
    %1437 = vmatpush.msra.mxu0 0.0
    %1438 = vmatpush.msra.mxu0 0.0
    %1439 = vmatpush.msra.mxu0 0.0
    %1440 = vmatpush.msra.mxu0 0.0
    %1441 = vmatpush.msra.mxu0 0.0
    %1442 = vmatpush.msra.mxu0 0.0
    %1443 = vmatpush.msra.mxu0 0.0
    %1444 = vmatpush.msra.mxu0 0.0
    %1445 = vmatpush.msra.mxu0 0.0
    %1446 = vmatpush.msra.mxu0 0.0
    %v1447 = vand.u32 %v156, 4294901760
    %1448 = vmatpush.msra.mxu0 %v1447
    %v1449 = vand.u32 %v155, 4294901760
    %1450 = vmatpush.msra.mxu0 %v1449
    %v1451 = vand.u32 %v1347, 4294901760
    %v1452 = vsub.f32 %v1347, %v1451
    %v1453 = vand.u32 %v1452, 4294901760
    %1454 = vmatmul.f32.gmra.mxu0 %v1453
    %v1455 = vpop.f32.mrf.mxu0
    %v1456 = vadd.f32 %v1431, %v1455
    %1457 = vdwg.mxu0
    %1458 = vmatpush.msra.mxu0 0.0
    %1459 = vmatpush.msra.mxu0 0.0
    %1460 = vmatpush.msra.mxu0 0.0
    %1461 = vmatpush.msra.mxu0 0.0
    %1462 = vmatpush.msra.mxu0 0.0
    %1463 = vmatpush.msra.mxu0 0.0
    %1464 = vmatpush.msra.mxu0 0.0
    %1465 = vmatpush.msra.mxu0 0.0
    %1466 = vmatpush.msra.mxu0 0.0
    %1467 = vmatpush.msra.mxu0 0.0
    %1468 = vmatpush.msra.mxu0 0.0
    %1469 = vmatpush.msra.mxu0 0.0
    %1470 = vmatpush.msra.mxu0 0.0
    %1471 = vmatpush.msra.mxu0 0.0
    %v1472 = vand.u32 %v156, 4294901760
    %v1473 = vsub.f32 %v156, %v1472
    %v1474 = vand.u32 %v1473, 4294901760
    %1475 = vmatpush.msra.mxu0 %v1474
    %v1476 = vand.u32 %v155, 4294901760
    %v1477 = vsub.f32 %v155, %v1476
    %v1478 = vand.u32 %v1477, 4294901760
    %1479 = vmatpush.msra.mxu0 %v1478
    %v1480 = vand.u32 %v1347, 4294901760
    %1481 = vmatmul.f32.gmra.mxu0 %v1480
    %v1482 = vpop.f32.mrf.mxu0
    %v1483 = vadd.f32 %v1456, %v1482
    %1484 = vdwg.mxu0
    %1485 = vmatpush.msra.mxu0 0.0
    %1486 = vmatpush.msra.mxu0 0.0
    %1487 = vmatpush.msra.mxu0 0.0
    %1488 = vmatpush.msra.mxu0 0.0
    %1489 = vmatpush.msra.mxu0 0.0
    %1490 = vmatpush.msra.mxu0 0.0
    %1491 = vmatpush.msra.mxu0 0.0
    %1492 = vmatpush.msra.mxu0 0.0
    %1493 = vmatpush.msra.mxu0 0.0
    %1494 = vmatpush.msra.mxu0 0.0
    %1495 = vmatpush.msra.mxu0 0.0
    %1496 = vmatpush.msra.mxu0 0.0
    %1497 = vmatpush.msra.mxu0 0.0
    %1498 = vmatpush.msra.mxu0 0.0
    %v1499 = vand.u32 %v156, 4294901760
    %1500 = vmatpush.msra.mxu0 %v1499
    %v1501 = vand.u32 %v155, 4294901760
    %1502 = vmatpush.msra.mxu0 %v1501
    %v1503 = vand.u32 %v1347, 4294901760
    %1504 = vmatmul.f32.gmra.mxu0 %v1503
    %v1505 = vpop.f32.mrf.mxu0
    %v1506 = vadd.f32 %v1483, %v1505
    %1507 = vdwg.mxu0
    %v1508 = vld [vmem:[#allocation5 + $0x4] sm:$0x1]
    %v1509 = vld [vmem:[#allocation5 + $0x9] sm:$0x1]
    %v1510 = vmul.f32 %v1344, %v1508
    %v1511 = vmul.f32 %v1506, %v1509
    %v1512 = vsub.f32 %v1510, %v1511
    %v1513 = vmul.f32 %v1344, %v1509
    %v1514 = vmul.f32 %v1506, %v1508
    %v1515 = vadd.f32 %v1513, %v1514
    %v1517 = vsel %vm187, %v1512, 0
    %1519 = vmatpush.msra.mxu0 0.0
    %1520 = vmatpush.msra.mxu0 0.0
    %1521 = vmatpush.msra.mxu0 0.0
    %1522 = vmatpush.msra.mxu0 0.0
    %1523 = vmatpush.msra.mxu0 0.0
    %1524 = vmatpush.msra.mxu0 0.0
    %1525 = vmatpush.msra.mxu0 0.0
    %1526 = vmatpush.msra.mxu0 0.0
    %1527 = vmatpush.msra.mxu0 0.0
    %1528 = vmatpush.msra.mxu0 0.0
    %1529 = vmatpush.msra.mxu0 0.0
    %1530 = vmatpush.msra.mxu0 0.0
    %1531 = vmatpush.msra.mxu0 0.0
    %1532 = vmatpush.msra.mxu0 0.0
    %v1533 = vand.u32 %v156, 4294901760
    %1534 = vmatpush.msra.mxu0 %v1533
    %v1535 = vand.u32 %v155, 4294901760
    %1536 = vmatpush.msra.mxu0 %v1535
    %v1537 = vand.u32 %v1517, 4294901760
    %v1538 = vsub.f32 %v1517, %v1537
    %v1539 = vand.u32 %v1538, 4294901760
    %v1540 = vsub.f32 %v1538, %v1539
    %v1541 = vand.u32 %v1540, 4294901760
    %1542 = vmatmul.f32.gmra.mxu0 %v1541
    %v1543 = vpop.f32.mrf.mxu0
    %v1544 = vadd.f32 0.0, %v1543
    %1545 = vdwg.mxu0
    %1546 = vmatpush.msra.mxu0 0.0
    %1547 = vmatpush.msra.mxu0 0.0
    %1548 = vmatpush.msra.mxu0 0.0
    %1549 = vmatpush.msra.mxu0 0.0
    %1550 = vmatpush.msra.mxu0 0.0
    %1551 = vmatpush.msra.mxu0 0.0
    %1552 = vmatpush.msra.mxu0 0.0
    %1553 = vmatpush.msra.mxu0 0.0
    %1554 = vmatpush.msra.mxu0 0.0
    %1555 = vmatpush.msra.mxu0 0.0
    %1556 = vmatpush.msra.mxu0 0.0
    %1557 = vmatpush.msra.mxu0 0.0
    %1558 = vmatpush.msra.mxu0 0.0
    %1559 = vmatpush.msra.mxu0 0.0
    %v1560 = vand.u32 %v156, 4294901760
    %v1561 = vsub.f32 %v156, %v1560
    %v1562 = vand.u32 %v1561, 4294901760
    %v1563 = vsub.f32 %v1561, %v1562
    %v1564 = vand.u32 %v1563, 4294901760
    %1565 = vmatpush.msra.mxu0 %v1564
    %v1566 = vand.u32 %v155, 4294901760
    %v1567 = vsub.f32 %v155, %v1566
    %v1568 = vand.u32 %v1567, 4294901760
    %v1569 = vsub.f32 %v1567, %v1568
    %v1570 = vand.u32 %v1569, 4294901760
    %1571 = vmatpush.msra.mxu0 %v1570
    %v1572 = vand.u32 %v1517, 4294901760
    %1573 = vmatmul.f32.gmra.mxu0 %v1572
    %v1574 = vpop.f32.mrf.mxu0
    %v1575 = vadd.f32 %v1544, %v1574
    %1576 = vdwg.mxu0
    %1577 = vmatpush.msra.mxu0 0.0
    %1578 = vmatpush.msra.mxu0 0.0
    %1579 = vmatpush.msra.mxu0 0.0
    %1580 = vmatpush.msra.mxu0 0.0
    %1581 = vmatpush.msra.mxu0 0.0
    %1582 = vmatpush.msra.mxu0 0.0
    %1583 = vmatpush.msra.mxu0 0.0
    %1584 = vmatpush.msra.mxu0 0.0
    %1585 = vmatpush.msra.mxu0 0.0
    %1586 = vmatpush.msra.mxu0 0.0
    %1587 = vmatpush.msra.mxu0 0.0
    %1588 = vmatpush.msra.mxu0 0.0
    %1589 = vmatpush.msra.mxu0 0.0
    %1590 = vmatpush.msra.mxu0 0.0
    %v1591 = vand.u32 %v156, 4294901760
    %v1592 = vsub.f32 %v156, %v1591
    %1593 = vmatpush.msra.mxu0 %v1592
    %v1594 = vand.u32 %v155, 4294901760
    %v1595 = vsub.f32 %v155, %v1594
    %1596 = vmatpush.msra.mxu0 %v1595
    %v1597 = vand.u32 %v1517, 4294901760
    %v1598 = vsub.f32 %v1517, %v1597
    %1599 = vmatmul.f32.gmra.mxu0 %v1598
    %v1600 = vpop.f32.mrf.mxu0
    %v1601 = vadd.f32 %v1575, %v1600
    %1602 = vdwg.mxu0
    %1603 = vmatpush.msra.mxu0 0.0
    %1604 = vmatpush.msra.mxu0 0.0
    %1605 = vmatpush.msra.mxu0 0.0
    %1606 = vmatpush.msra.mxu0 0.0
    %1607 = vmatpush.msra.mxu0 0.0
    %1608 = vmatpush.msra.mxu0 0.0
    %1609 = vmatpush.msra.mxu0 0.0
    %1610 = vmatpush.msra.mxu0 0.0
    %1611 = vmatpush.msra.mxu0 0.0
    %1612 = vmatpush.msra.mxu0 0.0
    %1613 = vmatpush.msra.mxu0 0.0
    %1614 = vmatpush.msra.mxu0 0.0
    %1615 = vmatpush.msra.mxu0 0.0
    %1616 = vmatpush.msra.mxu0 0.0
    %v1617 = vand.u32 %v156, 4294901760
    %1618 = vmatpush.msra.mxu0 %v1617
    %v1619 = vand.u32 %v155, 4294901760
    %1620 = vmatpush.msra.mxu0 %v1619
    %v1621 = vand.u32 %v1517, 4294901760
    %v1622 = vsub.f32 %v1517, %v1621
    %v1623 = vand.u32 %v1622, 4294901760
    %1624 = vmatmul.f32.gmra.mxu0 %v1623
    %v1625 = vpop.f32.mrf.mxu0
    %v1626 = vadd.f32 %v1601, %v1625
    %1627 = vdwg.mxu0
    %1628 = vmatpush.msra.mxu0 0.0
    %1629 = vmatpush.msra.mxu0 0.0
    %1630 = vmatpush.msra.mxu0 0.0
    %1631 = vmatpush.msra.mxu0 0.0
    %1632 = vmatpush.msra.mxu0 0.0
    %1633 = vmatpush.msra.mxu0 0.0
    %1634 = vmatpush.msra.mxu0 0.0
    %1635 = vmatpush.msra.mxu0 0.0
    %1636 = vmatpush.msra.mxu0 0.0
    %1637 = vmatpush.msra.mxu0 0.0
    %1638 = vmatpush.msra.mxu0 0.0
    %1639 = vmatpush.msra.mxu0 0.0
    %1640 = vmatpush.msra.mxu0 0.0
    %1641 = vmatpush.msra.mxu0 0.0
    %v1642 = vand.u32 %v156, 4294901760
    %v1643 = vsub.f32 %v156, %v1642
    %v1644 = vand.u32 %v1643, 4294901760
    %1645 = vmatpush.msra.mxu0 %v1644
    %v1646 = vand.u32 %v155, 4294901760
    %v1647 = vsub.f32 %v155, %v1646
    %v1648 = vand.u32 %v1647, 4294901760
    %1649 = vmatpush.msra.mxu0 %v1648
    %v1650 = vand.u32 %v1517, 4294901760
    %1651 = vmatmul.f32.gmra.mxu0 %v1650
    %v1652 = vpop.f32.mrf.mxu0
    %v1653 = vadd.f32 %v1626, %v1652
    %1654 = vdwg.mxu0
    %1655 = vmatpush.msra.mxu0 0.0
    %1656 = vmatpush.msra.mxu0 0.0
    %1657 = vmatpush.msra.mxu0 0.0
    %1658 = vmatpush.msra.mxu0 0.0
    %1659 = vmatpush.msra.mxu0 0.0
    %1660 = vmatpush.msra.mxu0 0.0
    %1661 = vmatpush.msra.mxu0 0.0
    %1662 = vmatpush.msra.mxu0 0.0
    %1663 = vmatpush.msra.mxu0 0.0
    %1664 = vmatpush.msra.mxu0 0.0
    %1665 = vmatpush.msra.mxu0 0.0
    %1666 = vmatpush.msra.mxu0 0.0
    %1667 = vmatpush.msra.mxu0 0.0
    %1668 = vmatpush.msra.mxu0 0.0
    %v1669 = vand.u32 %v156, 4294901760
    %1670 = vmatpush.msra.mxu0 %v1669
    %v1671 = vand.u32 %v155, 4294901760
    %1672 = vmatpush.msra.mxu0 %v1671
    %v1673 = vand.u32 %v1517, 4294901760
    %1674 = vmatmul.f32.gmra.mxu0 %v1673
    %v1675 = vpop.f32.mrf.mxu0
    %v1676 = vadd.f32 %v1653, %v1675
    %1677 = vdwg.mxu0
    %v1679 = vsel %vm187, %v1515, 0
    %1681 = vmatpush.msra.mxu0 0.0
    %1682 = vmatpush.msra.mxu0 0.0
    %1683 = vmatpush.msra.mxu0 0.0
    %1684 = vmatpush.msra.mxu0 0.0
    %1685 = vmatpush.msra.mxu0 0.0
    %1686 = vmatpush.msra.mxu0 0.0
    %1687 = vmatpush.msra.mxu0 0.0
    %1688 = vmatpush.msra.mxu0 0.0
    %1689 = vmatpush.msra.mxu0 0.0
    %1690 = vmatpush.msra.mxu0 0.0
    %1691 = vmatpush.msra.mxu0 0.0
    %1692 = vmatpush.msra.mxu0 0.0
    %1693 = vmatpush.msra.mxu0 0.0
    %1694 = vmatpush.msra.mxu0 0.0
    %v1695 = vand.u32 %v156, 4294901760
    %1696 = vmatpush.msra.mxu0 %v1695
    %v1697 = vand.u32 %v155, 4294901760
    %1698 = vmatpush.msra.mxu0 %v1697
    %v1699 = vand.u32 %v1679, 4294901760
    %v1700 = vsub.f32 %v1679, %v1699
    %v1701 = vand.u32 %v1700, 4294901760
    %v1702 = vsub.f32 %v1700, %v1701
    %v1703 = vand.u32 %v1702, 4294901760
    %1704 = vmatmul.f32.gmra.mxu0 %v1703
    %v1705 = vpop.f32.mrf.mxu0
    %v1706 = vadd.f32 0.0, %v1705
    %1707 = vdwg.mxu0
    %1708 = vmatpush.msra.mxu0 0.0
    %1709 = vmatpush.msra.mxu0 0.0
    %1710 = vmatpush.msra.mxu0 0.0
    %1711 = vmatpush.msra.mxu0 0.0
    %1712 = vmatpush.msra.mxu0 0.0
    %1713 = vmatpush.msra.mxu0 0.0
    %1714 = vmatpush.msra.mxu0 0.0
    %1715 = vmatpush.msra.mxu0 0.0
    %1716 = vmatpush.msra.mxu0 0.0
    %1717 = vmatpush.msra.mxu0 0.0
    %1718 = vmatpush.msra.mxu0 0.0
    %1719 = vmatpush.msra.mxu0 0.0
    %1720 = vmatpush.msra.mxu0 0.0
    %1721 = vmatpush.msra.mxu0 0.0
    %v1722 = vand.u32 %v156, 4294901760
    %v1723 = vsub.f32 %v156, %v1722
    %v1724 = vand.u32 %v1723, 4294901760
    %v1725 = vsub.f32 %v1723, %v1724
    %v1726 = vand.u32 %v1725, 4294901760
    %1727 = vmatpush.msra.mxu0 %v1726
    %v1728 = vand.u32 %v155, 4294901760
    %v1729 = vsub.f32 %v155, %v1728
    %v1730 = vand.u32 %v1729, 4294901760
    %v1731 = vsub.f32 %v1729, %v1730
    %v1732 = vand.u32 %v1731, 4294901760
    %1733 = vmatpush.msra.mxu0 %v1732
    %v1734 = vand.u32 %v1679, 4294901760
    %1735 = vmatmul.f32.gmra.mxu0 %v1734
    %v1736 = vpop.f32.mrf.mxu0
    %v1737 = vadd.f32 %v1706, %v1736
    %1738 = vdwg.mxu0
    %1739 = vmatpush.msra.mxu0 0.0
    %1740 = vmatpush.msra.mxu0 0.0
    %1741 = vmatpush.msra.mxu0 0.0
    %1742 = vmatpush.msra.mxu0 0.0
    %1743 = vmatpush.msra.mxu0 0.0
    %1744 = vmatpush.msra.mxu0 0.0
    %1745 = vmatpush.msra.mxu0 0.0
    %1746 = vmatpush.msra.mxu0 0.0
    %1747 = vmatpush.msra.mxu0 0.0
    %1748 = vmatpush.msra.mxu0 0.0
    %1749 = vmatpush.msra.mxu0 0.0
    %1750 = vmatpush.msra.mxu0 0.0
    %1751 = vmatpush.msra.mxu0 0.0
    %1752 = vmatpush.msra.mxu0 0.0
    %v1753 = vand.u32 %v156, 4294901760
    %v1754 = vsub.f32 %v156, %v1753
    %1755 = vmatpush.msra.mxu0 %v1754
    %v1756 = vand.u32 %v155, 4294901760
    %v1757 = vsub.f32 %v155, %v1756
    %1758 = vmatpush.msra.mxu0 %v1757
    %v1759 = vand.u32 %v1679, 4294901760
    %v1760 = vsub.f32 %v1679, %v1759
    %1761 = vmatmul.f32.gmra.mxu0 %v1760
    %v1762 = vpop.f32.mrf.mxu0
    %v1763 = vadd.f32 %v1737, %v1762
    %1764 = vdwg.mxu0
    %1765 = vmatpush.msra.mxu0 0.0
    %1766 = vmatpush.msra.mxu0 0.0
    %1767 = vmatpush.msra.mxu0 0.0
    %1768 = vmatpush.msra.mxu0 0.0
    %1769 = vmatpush.msra.mxu0 0.0
    %1770 = vmatpush.msra.mxu0 0.0
    %1771 = vmatpush.msra.mxu0 0.0
    %1772 = vmatpush.msra.mxu0 0.0
    %1773 = vmatpush.msra.mxu0 0.0
    %1774 = vmatpush.msra.mxu0 0.0
    %1775 = vmatpush.msra.mxu0 0.0
    %1776 = vmatpush.msra.mxu0 0.0
    %1777 = vmatpush.msra.mxu0 0.0
    %1778 = vmatpush.msra.mxu0 0.0
    %v1779 = vand.u32 %v156, 4294901760
    %1780 = vmatpush.msra.mxu0 %v1779
    %v1781 = vand.u32 %v155, 4294901760
    %1782 = vmatpush.msra.mxu0 %v1781
    %v1783 = vand.u32 %v1679, 4294901760
    %v1784 = vsub.f32 %v1679, %v1783
    %v1785 = vand.u32 %v1784, 4294901760
    %1786 = vmatmul.f32.gmra.mxu0 %v1785
    %v1787 = vpop.f32.mrf.mxu0
    %v1788 = vadd.f32 %v1763, %v1787
    %1789 = vdwg.mxu0
    %1790 = vmatpush.msra.mxu0 0.0
    %1791 = vmatpush.msra.mxu0 0.0
    %1792 = vmatpush.msra.mxu0 0.0
    %1793 = vmatpush.msra.mxu0 0.0
    %1794 = vmatpush.msra.mxu0 0.0
    %1795 = vmatpush.msra.mxu0 0.0
    %1796 = vmatpush.msra.mxu0 0.0
    %1797 = vmatpush.msra.mxu0 0.0
    %1798 = vmatpush.msra.mxu0 0.0
    %1799 = vmatpush.msra.mxu0 0.0
    %1800 = vmatpush.msra.mxu0 0.0
    %1801 = vmatpush.msra.mxu0 0.0
    %1802 = vmatpush.msra.mxu0 0.0
    %1803 = vmatpush.msra.mxu0 0.0
    %v1804 = vand.u32 %v156, 4294901760
    %v1805 = vsub.f32 %v156, %v1804
    %v1806 = vand.u32 %v1805, 4294901760
    %1807 = vmatpush.msra.mxu0 %v1806
    %v1808 = vand.u32 %v155, 4294901760
    %v1809 = vsub.f32 %v155, %v1808
    %v1810 = vand.u32 %v1809, 4294901760
    %1811 = vmatpush.msra.mxu0 %v1810
    %v1812 = vand.u32 %v1679, 4294901760
    %1813 = vmatmul.f32.gmra.mxu0 %v1812
    %v1814 = vpop.f32.mrf.mxu0
    %v1815 = vadd.f32 %v1788, %v1814
    %1816 = vdwg.mxu0
    %1817 = vmatpush.msra.mxu0 0.0
    %1818 = vmatpush.msra.mxu0 0.0
    %1819 = vmatpush.msra.mxu0 0.0
    %1820 = vmatpush.msra.mxu0 0.0
    %1821 = vmatpush.msra.mxu0 0.0
    %1822 = vmatpush.msra.mxu0 0.0
    %1823 = vmatpush.msra.mxu0 0.0
    %1824 = vmatpush.msra.mxu0 0.0
    %1825 = vmatpush.msra.mxu0 0.0
    %1826 = vmatpush.msra.mxu0 0.0
    %1827 = vmatpush.msra.mxu0 0.0
    %1828 = vmatpush.msra.mxu0 0.0
    %1829 = vmatpush.msra.mxu0 0.0
    %1830 = vmatpush.msra.mxu0 0.0
    %v1831 = vand.u32 %v156, 4294901760
    %1832 = vmatpush.msra.mxu0 %v1831
    %v1833 = vand.u32 %v155, 4294901760
    %1834 = vmatpush.msra.mxu0 %v1833
    %v1835 = vand.u32 %v1679, 4294901760
    %1836 = vmatmul.f32.gmra.mxu0 %v1835
    %v1837 = vpop.f32.mrf.mxu0
    %v1838 = vadd.f32 %v1815, %v1837
    %1839 = vdwg.mxu0
    %v1840 = vmul.f32 %v1676, %v1676
    %v1841 = vmul.f32 %v1838, %v1838
    %v1842 = vadd.f32 %v1840, %v1841
    %v1843 = vshra.s32 %v73, 3
    %v1844 = vshra.s32 %v74, 3
    %v1845 = vand.u32 %v1843, 1
    %v1846 = vand.u32 %v1844, 1
    %v1847 = vcvt.s32.f32 %v1845
    %v1848 = vcvt.s32.f32 %v1846
    %v1849 = vmul.f32 %v1847, 2.0
    %v1850 = vmul.f32 %v1848, 2.0
    %v1851 = vsub.f32 1.0, %v1849
    %v1852 = vsub.f32 1.0, %v1850
    %vm1853 = vcmp.eq.s32.totalorder %v76, 0
    %v1854 = vsel %vm1853, %v1851, 0.0
    %v1855 = vsel %vm1853, %v1852, 0.0
    %v1856 = vadd.f32 %v1854, 0.0
    %v1857 = vadd.f32 %v1855, 0.0
    %v1858 = vshra.s32 %v73, 2
    %v1859 = vshra.s32 %v74, 2
    %v1860 = vand.u32 %v1858, 1
    %v1861 = vand.u32 %v1859, 1
    %v1862 = vcvt.s32.f32 %v1860
    %v1863 = vcvt.s32.f32 %v1861
    %v1864 = vmul.f32 %v1862, 2.0
    %v1865 = vmul.f32 %v1863, 2.0
    %v1866 = vsub.f32 1.0, %v1864
    %v1867 = vsub.f32 1.0, %v1865
    %vm1868 = vcmp.eq.s32.totalorder %v76, 1
    %v1869 = vsel %vm1868, %v1866, 0.0
    %v1870 = vsel %vm1868, %v1867, 0.0
    %v1871 = vadd.f32 %v1856, %v1869
    %v1872 = vadd.f32 %v1857, %v1870
    %v1873 = vshra.s32 %v73, 1
    %v1874 = vshra.s32 %v74, 1
    %v1875 = vand.u32 %v1873, 1
    %v1876 = vand.u32 %v1874, 1
    %v1877 = vcvt.s32.f32 %v1875
    %v1878 = vcvt.s32.f32 %v1876
    %v1879 = vmul.f32 %v1877, 2.0
    %v1880 = vmul.f32 %v1878, 2.0
    %v1881 = vsub.f32 1.0, %v1879
    %v1882 = vsub.f32 1.0, %v1880
    %vm1883 = vcmp.eq.s32.totalorder %v76, 2
    %v1884 = vsel %vm1883, %v1881, 0.0
    %v1885 = vsel %vm1883, %v1882, 0.0
    %v1886 = vadd.f32 %v1871, %v1884
    %v1887 = vadd.f32 %v1872, %v1885
    %v1888 = vand.u32 %v73, 1
    %v1889 = vand.u32 %v74, 1
    %v1890 = vcvt.s32.f32 %v1888
    %v1891 = vcvt.s32.f32 %v1889
    %v1892 = vmul.f32 %v1890, 2.0
    %v1893 = vmul.f32 %v1891, 2.0
    %v1894 = vsub.f32 1.0, %v1892
    %v1895 = vsub.f32 1.0, %v1893
    %vm1896 = vcmp.eq.s32.totalorder %v76, 3
    %v1897 = vsel %vm1896, %v1894, 0.0
    %v1898 = vsel %vm1896, %v1895, 0.0
    %v1899 = vadd.f32 %v1886, %v1897
    %v1900 = vadd.f32 %v1887, %v1898
    %v1902 = vsel %vm187, %v1842, 0
    %1904 = vmatpush.msra.mxu0 0.0
    %1905 = vmatpush.msra.mxu0 0.0
    %1906 = vmatpush.msra.mxu0 0.0
    %1907 = vmatpush.msra.mxu0 0.0
    %1908 = vmatpush.msra.mxu0 0.0
    %1909 = vmatpush.msra.mxu0 0.0
    %1910 = vmatpush.msra.mxu0 0.0
    %1911 = vmatpush.msra.mxu0 0.0
    %1912 = vmatpush.msra.mxu0 0.0
    %1913 = vmatpush.msra.mxu0 0.0
    %1914 = vmatpush.msra.mxu0 0.0
    %1915 = vmatpush.msra.mxu0 0.0
    %1916 = vmatpush.msra.mxu0 0.0
    %1917 = vmatpush.msra.mxu0 0.0
    %v1918 = vand.u32 %v1900, 4294901760
    %1919 = vmatpush.msra.mxu0 %v1918
    %v1920 = vand.u32 %v1899, 4294901760
    %1921 = vmatpush.msra.mxu0 %v1920
    %v1922 = vand.u32 %v1902, 4294901760
    %v1923 = vsub.f32 %v1902, %v1922
    %v1924 = vand.u32 %v1923, 4294901760
    %v1925 = vsub.f32 %v1923, %v1924
    %v1926 = vand.u32 %v1925, 4294901760
    %1927 = vmatmul.f32.gmra.mxu0 %v1926
    %v1928 = vpop.f32.mrf.mxu0
    %v1929 = vadd.f32 0.0, %v1928
    %1930 = vdwg.mxu0
    %1931 = vmatpush.msra.mxu0 0.0
    %1932 = vmatpush.msra.mxu0 0.0
    %1933 = vmatpush.msra.mxu0 0.0
    %1934 = vmatpush.msra.mxu0 0.0
    %1935 = vmatpush.msra.mxu0 0.0
    %1936 = vmatpush.msra.mxu0 0.0
    %1937 = vmatpush.msra.mxu0 0.0
    %1938 = vmatpush.msra.mxu0 0.0
    %1939 = vmatpush.msra.mxu0 0.0
    %1940 = vmatpush.msra.mxu0 0.0
    %1941 = vmatpush.msra.mxu0 0.0
    %1942 = vmatpush.msra.mxu0 0.0
    %1943 = vmatpush.msra.mxu0 0.0
    %1944 = vmatpush.msra.mxu0 0.0
    %v1945 = vand.u32 %v1900, 4294901760
    %v1946 = vsub.f32 %v1900, %v1945
    %v1947 = vand.u32 %v1946, 4294901760
    %v1948 = vsub.f32 %v1946, %v1947
    %v1949 = vand.u32 %v1948, 4294901760
    %1950 = vmatpush.msra.mxu0 %v1949
    %v1951 = vand.u32 %v1899, 4294901760
    %v1952 = vsub.f32 %v1899, %v1951
    %v1953 = vand.u32 %v1952, 4294901760
    %v1954 = vsub.f32 %v1952, %v1953
    %v1955 = vand.u32 %v1954, 4294901760
    %1956 = vmatpush.msra.mxu0 %v1955
    %v1957 = vand.u32 %v1902, 4294901760
    %1958 = vmatmul.f32.gmra.mxu0 %v1957
    %v1959 = vpop.f32.mrf.mxu0
    %v1960 = vadd.f32 %v1929, %v1959
    %1961 = vdwg.mxu0
    %1962 = vmatpush.msra.mxu0 0.0
    %1963 = vmatpush.msra.mxu0 0.0
    %1964 = vmatpush.msra.mxu0 0.0
    %1965 = vmatpush.msra.mxu0 0.0
    %1966 = vmatpush.msra.mxu0 0.0
    %1967 = vmatpush.msra.mxu0 0.0
    %1968 = vmatpush.msra.mxu0 0.0
    %1969 = vmatpush.msra.mxu0 0.0
    %1970 = vmatpush.msra.mxu0 0.0
    %1971 = vmatpush.msra.mxu0 0.0
    %1972 = vmatpush.msra.mxu0 0.0
    %1973 = vmatpush.msra.mxu0 0.0
    %1974 = vmatpush.msra.mxu0 0.0
    %1975 = vmatpush.msra.mxu0 0.0
    %v1976 = vand.u32 %v1900, 4294901760
    %v1977 = vsub.f32 %v1900, %v1976
    %1978 = vmatpush.msra.mxu0 %v1977
    %v1979 = vand.u32 %v1899, 4294901760
    %v1980 = vsub.f32 %v1899, %v1979
    %1981 = vmatpush.msra.mxu0 %v1980
    %v1982 = vand.u32 %v1902, 4294901760
    %v1983 = vsub.f32 %v1902, %v1982
    %1984 = vmatmul.f32.gmra.mxu0 %v1983
    %v1985 = vpop.f32.mrf.mxu0
    %v1986 = vadd.f32 %v1960, %v1985
    %1987 = vdwg.mxu0
    %1988 = vmatpush.msra.mxu0 0.0
    %1989 = vmatpush.msra.mxu0 0.0
    %1990 = vmatpush.msra.mxu0 0.0
    %1991 = vmatpush.msra.mxu0 0.0
    %1992 = vmatpush.msra.mxu0 0.0
    %1993 = vmatpush.msra.mxu0 0.0
    %1994 = vmatpush.msra.mxu0 0.0
    %1995 = vmatpush.msra.mxu0 0.0
    %1996 = vmatpush.msra.mxu0 0.0
    %1997 = vmatpush.msra.mxu0 0.0
    %1998 = vmatpush.msra.mxu0 0.0
    %1999 = vmatpush.msra.mxu0 0.0
    %2000 = vmatpush.msra.mxu0 0.0
    %2001 = vmatpush.msra.mxu0 0.0
    %v2002 = vand.u32 %v1900, 4294901760
    %2003 = vmatpush.msra.mxu0 %v2002
    %v2004 = vand.u32 %v1899, 4294901760
    %2005 = vmatpush.msra.mxu0 %v2004
    %v2006 = vand.u32 %v1902, 4294901760
    %v2007 = vsub.f32 %v1902, %v2006
    %v2008 = vand.u32 %v2007, 4294901760
    %2009 = vmatmul.f32.gmra.mxu0 %v2008
    %v2010 = vpop.f32.mrf.mxu0
    %v2011 = vadd.f32 %v1986, %v2010
    %2012 = vdwg.mxu0
    %2013 = vmatpush.msra.mxu0 0.0
    %2014 = vmatpush.msra.mxu0 0.0
    %2015 = vmatpush.msra.mxu0 0.0
    %2016 = vmatpush.msra.mxu0 0.0
    %2017 = vmatpush.msra.mxu0 0.0
    %2018 = vmatpush.msra.mxu0 0.0
    %2019 = vmatpush.msra.mxu0 0.0
    %2020 = vmatpush.msra.mxu0 0.0
    %2021 = vmatpush.msra.mxu0 0.0
    %2022 = vmatpush.msra.mxu0 0.0
    %2023 = vmatpush.msra.mxu0 0.0
    %2024 = vmatpush.msra.mxu0 0.0
    %2025 = vmatpush.msra.mxu0 0.0
    %2026 = vmatpush.msra.mxu0 0.0
    %v2027 = vand.u32 %v1900, 4294901760
    %v2028 = vsub.f32 %v1900, %v2027
    %v2029 = vand.u32 %v2028, 4294901760
    %2030 = vmatpush.msra.mxu0 %v2029
    %v2031 = vand.u32 %v1899, 4294901760
    %v2032 = vsub.f32 %v1899, %v2031
    %v2033 = vand.u32 %v2032, 4294901760
    %2034 = vmatpush.msra.mxu0 %v2033
    %v2035 = vand.u32 %v1902, 4294901760
    %2036 = vmatmul.f32.gmra.mxu0 %v2035
    %v2037 = vpop.f32.mrf.mxu0
    %v2038 = vadd.f32 %v2011, %v2037
    %2039 = vdwg.mxu0
    %2040 = vmatpush.msra.mxu0 0.0
    %2041 = vmatpush.msra.mxu0 0.0
    %2042 = vmatpush.msra.mxu0 0.0
    %2043 = vmatpush.msra.mxu0 0.0
    %2044 = vmatpush.msra.mxu0 0.0
    %2045 = vmatpush.msra.mxu0 0.0
    %2046 = vmatpush.msra.mxu0 0.0
    %2047 = vmatpush.msra.mxu0 0.0
    %2048 = vmatpush.msra.mxu0 0.0
    %2049 = vmatpush.msra.mxu0 0.0
    %2050 = vmatpush.msra.mxu0 0.0
    %2051 = vmatpush.msra.mxu0 0.0
    %2052 = vmatpush.msra.mxu0 0.0
    %2053 = vmatpush.msra.mxu0 0.0
    %v2054 = vand.u32 %v1900, 4294901760
    %2055 = vmatpush.msra.mxu0 %v2054
    %v2056 = vand.u32 %v1899, 4294901760
    %2057 = vmatpush.msra.mxu0 %v2056
    %v2058 = vand.u32 %v1902, 4294901760
    %2059 = vmatmul.f32.gmra.mxu0 %v2058
    %v2060 = vpop.f32.mrf.mxu0
    %v2061 = vadd.f32 %v2038, %v2060
    %2062 = vdwg.mxu0
    %2063 = vst [vmem:[%s2] sm:$0x1] %v2061
    // Predicated region
    $region18: #{_forward_batch.1} parent=1 // pred_check
      _
    $region19: #{_forward_batch.1} parent=1 // pred_check_branch
      %2065 = sbr.rel (0) target = $region21
    $region20: #{_forward_batch.1} parent=1 // pred_region
      _
    $region21: #{_forward_batch.1} parent=1 // pred_fallthru
      _
    // Predicated region
    $region22: #{_forward_batch.1} parent=1 // pred_check
      _
    $region23: #{_forward_batch.1} parent=1 // pred_check_branch
      %2067 = sbr.rel (0) target = $region25
    $region24: #{_forward_batch.1} parent=1 // pred_region
      _
    $region25: #{_forward_batch.1} parent=1 // pred_fallthru
      _
    %2068 = vsyncpa [#allocation3], 1
    %2069 = vsyncpa [#allocation4], 1

</llo_original>
